<compile_context>
chip_gen: v6e
topology: v6e:2x2x1
jax: 0.10.0
libtpu: 0.0.40
codegen_flags: <defaults>
</compile_context>

<pallas_src>
import jax
import jax.numpy as jnp
from jax import lax
from jax.experimental import pallas as pl
from jax.experimental.pallas import tpu as pltpu


def _round_up(x, m):
    return (x + m - 1) // m * m


def _vmem_capacity_bytes():
    """Physical VMEM capacity; conservative (v7x = 64 MiB) fallback if the query fails."""
    try:
        return int(pltpu.get_tpu_info().vmem_capacity_bytes)
    except Exception:
        return 64 << 20


def _choose_tm(m, per_row_bytes, fixed_bytes, budget, max_tm=2048):
    """Largest multiple-of-128 row tile that fits the VMEM budget while keeping >=4 grid
    steps whenever M permits (so both v7x TensorCores get work)."""
    m128 = _round_up(max(m, 1), 128)
    max_steps = m128 // 128
    min_steps = min(4, max_steps)
    tm = 128
    for cand in (256, 512, 1024, 2048):
        if cand > max_tm or cand > m128:
            break
        if -(-m128 // cand) < min_steps:          # would starve the second TensorCore
            break
        if fixed_bytes + cand * per_row_bytes > budget:
            break
        tm = cand
    return tm


def _dot_onehot_kernel(idx_ref, u_ref, tab_ref, o_ref):
    """One grid step (small-vocab path).

    idx_ref : VMEM (TM, 1) int32   item indices for this tile
    u_ref   : VMEM (TM, D) float32 user representations for this tile
    tab_ref : VMEM (N, D)  float32 item embedding table (resident; row 0 == 0)
    o_ref   : VMEM (1, TM) float32 lane-dense output tile of dot products
    """
    tm, d = u_ref.shape
    n = tab_ref.shape[0]

    # One-hot gather on the MXU: (TM, N) @ (N, D) -> (TM, D).
    col_ids = lax.broadcasted_iota(jnp.int32, (tm, n), 1)
    onehot = (idx_ref[...] == col_ids).astype(jnp.float32)
    gathered = lax.dot_general(
        onehot, tab_ref[...],
        dimension_numbers=(((1,), (0,)), ((), ())),
        precision=lax.Precision.HIGHEST,   # one-hot lhs is exact; keeps the f32 table exact
        preferred_element_type=jnp.float32)

    prod = u_ref[...] * gathered

    # Row-wise reduce written lane-dense: (1, D) @ (TM, D)^T -> (1, TM).
    ones_row = jnp.ones((1, d), dtype=jnp.float32)
    o_ref[...] = lax.dot_general(
        ones_row, prod,
        dimension_numbers=(((1,), (1,)), ((), ())),
        precision=lax.Precision.HIGHEST,
        preferred_element_type=jnp.float32)


def _dot_pregathered_kernel(u_ref, e_ref, o_ref):
    """One grid step (large-vocab path): pure streamed multiply-reduce.

    u_ref : VMEM (TM, D) float32   user representations
    e_ref : VMEM (TM, D) float32   pre-gathered item embeddings
    o_ref : VMEM (1, TM) float32   lane-dense output tile
    """
    tm, d = u_ref.shape
    prod = u_ref[...] * e_ref[...]
    ones_row = jnp.ones((1, d), dtype=jnp.float32)
    o_ref[...] = lax.dot_general(
        ones_row, prod,
        dimension_numbers=(((1,), (1,)), ((), ())),
        precision=lax.Precision.HIGHEST,
        preferred_element_type=jnp.float32)


def encoder_forward(user_rep, item_seq, emb_table, *, force_pregather=False):
    """Pallas equivalent of Encoder.forward.

    user_rep : (B, S, D) float32
    item_seq : (B, S)    int32
    emb_table: (N, D)    float32, row 0 zeros (padding_idx=0)
    returns  : (B, S)    float32
    """
    B, S, D = user_rep.shape
    N, Dt = emb_table.shape
    assert D == Dt, "user_rep feature dim must match embedding dim"
    M = B * S

    vmem_cap = _vmem_capacity_bytes()
    budget = max(vmem_cap - (16 << 20), 16 << 20)   # leave headroom under the physical cap

    u2d = user_rep.reshape(M, D).astype(jnp.float32)
    # Clamp once in the wrapper (PyTorch raises on OOB; clamping documented above).
    idx = jnp.clip(item_seq.reshape(M).astype(jnp.int32), 0, N - 1)
    tab = emb_table.astype(jnp.float32)
    table_bytes = N * D * 4

    # In-kernel one-hot gather only for small vocabularies; otherwise hoist the gather.
    use_onehot = (not force_pregather) and (N <= 1024) and (2 * table_bytes <= budget // 4)

    if use_onehot:
        # double-buffered: u row + idx element + output element
        per_row = 2 * (D * 4 + 4 + 4)
        # cap the (TM, N) one-hot intermediate at ~2 MiB
        max_tm = max(128, ((2 << 20) // (N * 4)) // 128 * 128)
        TM = _choose_tm(M, per_row, 2 * table_bytes, budget, max_tm=max_tm)
        fixed_bytes = 2 * table_bytes
    else:
        per_row = 2 * (2 * D * 4 + 4)
        TM = _choose_tm(M, per_row, 0, budget)
        fixed_bytes = 0

    M_pad = _round_up(M, TM)
    grid = (M_pad // TM,)

    if M_pad != M:
        u2d = jnp.pad(u2d, ((0, M_pad - M), (0, 0)))
        idx = jnp.pad(idx, (0, M_pad - M))   # pad with 0 -> padding row -> sliced off anyway

    vmem_needed = fixed_bytes + TM * per_row
    vmem_limit = int(min(max(vmem_needed + (4 << 20), 32 << 20), vmem_cap - (8 << 20)))

    compiler_params = pltpu.CompilerParams(
        dimension_semantics=("parallel",),
        vmem_limit_bytes=vmem_limit,
    )
    out_spec = pl.BlockSpec((1, TM), lambda i: (0, i))
    out_shape = jax.ShapeDtypeStruct((1, M_pad), jnp.float32)

    if use_onehot:
        cost = pl.CostEstimate(
            flops=2 * M_pad * N * D + 3 * M_pad * D,
            transcendentals=0,
            bytes_accessed=M_pad * D * 4 + M_pad * 4 + table_bytes + M_pad * 4,
        )
        out = pl.pallas_call(
            _dot_onehot_kernel,
            out_shape=out_shape,
            grid=grid,
            in_specs=[
                pl.BlockSpec((TM, 1), lambda i: (i, 0)),   # item indices, streamed per tile
                pl.BlockSpec((TM, D), lambda i: (i, 0)),   # user_rep tile, double-buffered
                pl.BlockSpec((N, D), lambda i: (0, 0)),    # embedding table, VMEM-resident
            ],
            out_specs=out_spec,
            compiler_params=compiler_params,
            cost_estimate=cost,
        )(idx.reshape(M_pad, 1), u2d, tab)
    else:
        # Gather hoisted to XLA; the kernel is a memory-bound streamed multiply-reduce.
        emb2d = jnp.take(tab, idx, axis=0)
        cost = pl.CostEstimate(
            flops=3 * M_pad * D,
            transcendentals=0,
            bytes_accessed=2 * M_pad * D * 4 + M_pad * 4,
        )
        out = pl.pallas_call(
            _dot_pregathered_kernel,
            out_shape=out_shape,
            grid=grid,
            in_specs=[
                pl.BlockSpec((TM, D), lambda i: (i, 0)),
                pl.BlockSpec((TM, D), lambda i: (i, 0)),
            ],
            out_specs=out_spec,
            compiler_params=compiler_params,
            cost_estimate=cost,
        )(u2d, emb2d)

    return out.reshape(M_pad)[:M].reshape(B, S)


def make_scaled_embedding(key, n_items, dim_item):
    """Deterministic ScaledEmbedding init: normal / dim_item, padding row 0 zeroed."""
    w = jax.random.normal(key, (n_items, dim_item), dtype=jnp.float32) / dim_item
    return w.at[0].set(0.0)  # padding_idx=0


if __name__ == "__main__":
    # Small shapes consistent with the module's forward:
    #   batch=2, seq=8, dim_item=32, n_items=64
    B, S, D, N_ITEMS = 2, 8, 32, 64

    key = jax.random.PRNGKey(0)
    k_emb, k_user, k_items = jax.random.split(key, 3)

    # Parameters (only item_embedding participates in forward()).
    emb_table = make_scaled_embedding(k_emb, N_ITEMS, D)
    # TODO(synk): item2hid / position_enc / layer_stack / dropout are only used by
    # user_representation(), not by forward(), so they are not materialized here.

    user_rep = jax.random.normal(k_user, (B, S, D), dtype=jnp.float32)
    item_seq = jax.random.randint(k_items, (B, S), minval=0, maxval=N_ITEMS, dtype=jnp.int32)
    item_seq = item_seq.at[0, -2:].set(0)  # include padding ids to exercise padding_idx=0

    # Pure-JAX reference.
    ref = jnp.sum(user_rep * emb_table[item_seq], axis=-1)

    # Small-vocab path (in-kernel one-hot MXU gather).
    out = jax.block_until_ready(encoder_forward(user_rep, item_seq, emb_table))
    assert out.shape == (B, S)
    assert jnp.allclose(out, ref, atol=1e-4, rtol=1e-4), "one-hot path mismatch vs reference"

    # Large-vocab path (wrapper-side gather, streamed multiply-reduce kernel).
    out2 = jax.block_until_ready(
        encoder_forward(user_rep, item_seq, emb_table, force_pregather=True))
    assert jnp.allclose(out2, ref, atol=1e-4, rtol=1e-4), "pregather path mismatch vs reference"

    print("KERNEL_OK")
</pallas_src>

<mosaic_0001>
module attributes {stable_mosaic.version = 11 : i64} {
  func.func @_dot_onehot_kernel(%arg0: i32, %arg1: memref<128x1xi32, #tpu.memory_space<vmem>>, %arg2: memref<128x32xf32, #tpu.memory_space<vmem>>, %arg3: memref<64x32xf32, #tpu.memory_space<vmem>>, %arg4: memref<1x128xf32, #tpu.memory_space<vmem>>) attributes {dimension_semantics = [#tpu.dimension_semantics<parallel>], iteration_bounds = array<i64: 1>, scalar_prefetch = 0 : i64, scratch_operands = 0 : i64, tpu.core_type = #tpu.core_type<tc>, window_params = [{transform_indices = @transform_0, window_bounds = array<i64: 128, 1>}, {transform_indices = @transform_1, window_bounds = array<i64: 128, 32>}, {pipeline_mode = #tpu.pipeline_mode<synchronous>, transform_indices = @transform_2, window_bounds = array<i64: 64, 32>}, {transform_indices = @transform_3, window_bounds = array<i64: 1, 128>}]} {
    %0 = tpu.iota {dimensions = array<i32: 1>} : vector<128x64xi32>
    %c0 = arith.constant 0 : index
    %c0_0 = arith.constant 0 : index
    %1 = vector.load %arg1[%c0, %c0_0] : memref<128x1xi32, #tpu.memory_space<vmem>>, vector<128x1xi32>
    %2 = vector.broadcast %1 : vector<128x1xi32> to vector<128x64xi32>
    %3 = arith.cmpi eq, %2, %0 : vector<128x64xi32>
    %4 = arith.extui %3 : vector<128x64xi1> to vector<128x64xi32>
    %5 = arith.sitofp %4 : vector<128x64xi32> to vector<128x64xf32>
    %c0_1 = arith.constant 0 : index
    %c0_2 = arith.constant 0 : index
    %6 = vector.load %arg3[%c0_1, %c0_2] : memref<64x32xf32, #tpu.memory_space<vmem>>, vector<64x32xf32>
    %cst = arith.constant dense<0.000000e+00> : vector<128x32xf32>
    %7 = tpu.matmul %5, %6, %cst {dimension_numbers = #tpu.dot_dimension_numbers<[1], [0], [0], [1], [0, 0, 1, 1], [], []>, precision = #tpu.contract_precision<fp32>} : vector<128x64xf32>, vector<64x32xf32>, vector<128x32xf32> -> vector<128x32xf32>
    %c0_3 = arith.constant 0 : index
    %c0_4 = arith.constant 0 : index
    %8 = vector.load %arg2[%c0_3, %c0_4] : memref<128x32xf32, #tpu.memory_space<vmem>>, vector<128x32xf32>
    %9 = arith.mulf %8, %7 : vector<128x32xf32>
    %cst_5 = arith.constant 1.000000e+00 : f32
    %10 = vector.broadcast %cst_5 : f32 to vector<1x32xf32>
    %cst_6 = arith.constant dense<0.000000e+00> : vector<1x128xf32>
    %11 = tpu.matmul %10, %9, %cst_6 {dimension_numbers = #tpu.dot_dimension_numbers<[1], [1], [0], [0], [0, 0, 1, 0], [], []>, precision = #tpu.contract_precision<fp32>} : vector<1x32xf32>, vector<128x32xf32>, vector<1x128xf32> -> vector<1x128xf32>
    %c0_7 = arith.constant 0 : index
    %c0_8 = arith.constant 0 : index
    %12 = vector.load %arg4[%c0_7, %c0_8] : memref<1x128xf32, #tpu.memory_space<vmem>>, vector<1x128xf32>
    tpu.vector_store %arg4[%c0_7, %c0_8], %11 {strides = array<i32>} : memref<1x128xf32, #tpu.memory_space<vmem>>, vector<1x128xf32>,
    return
  }
  func.func @transform_0(%arg0: i32) -> (i32, i32) {
    %c0_i32 = arith.constant 0 : i32
    %c0_i32_0 = arith.constant 0 : i32
    return %arg0, %c0_i32 : i32, i32
  }
  func.func @transform_1(%arg0: i32) -> (i32, i32) {
    %c0_i32 = arith.constant 0 : i32
    %c0_i32_0 = arith.constant 0 : i32
    return %arg0, %c0_i32 : i32, i32
  }
  func.func @transform_2(%arg0: i32) -> (i32, i32) {
    %c0_i32 = arith.constant 0 : i32
    %c0_i32_0 = arith.constant 0 : i32
    %c0_i32_1 = arith.constant 0 : i32
    return %c0_i32, %c0_i32_0 : i32, i32
  }
  func.func @transform_3(%arg0: i32) -> (i32, i32) {
    %c0_i32 = arith.constant 0 : i32
    %c0_i32_0 = arith.constant 0 : i32
    return %c0_i32, %arg0 : i32, i32
  }
}

</mosaic_0001>

<llo_original>
// kernel: tpu_custom_call.1
$region0: #{tpu_custom_call.1}
  #allocation0 [shape = 'u32[]', space=smem, size = 0x4, offset = 0x4, fixed_abs, tag = 'smem constant byte address 0x4 - core index']
  #allocation1 [shape = 'u32[144,128]{1,0:T(1,128)}', space=vmem, size = 0x12000, scoped, tag = 'internal scratch']
  %s0 = inlined_call_operand.vmem [shape: s32[128,1], index: 0, kind: input, shape index: {}]
  %s1 = inlined_call_operand.vmem [shape: f32[128,32], index: 1, kind: input, shape index: {}]
  %s2 = inlined_call_operand.vmem [shape: f32[64,32], index: 2, kind: input, shape index: {}]
  %s3 = inlined_call_operand.hbm [shape: f32[1,128], index: 3, kind: output, shape index: {}]
  %s4 = sld [smem:[#allocation0]]
  $region22: #{tpu_custom_call.1} parent=0
    _
  %s6 = ssub.s32 1, %s4
  %s7 = scalar_select 0, %s6, %s4
  $region1: #{tpu_custom_call.1} parent=0
    #allocation2 [shape = 'u8[512]{0}', space=vmem, size = 0x400, scoped, tag = 'output window, operand 0, single buffered']
    #allocation3 [shape = 's32[1]{0}', space=sflag, size = 0x4, scoped, tag = 'scoped memory for tpu_custom_call.1']
    %8 = vsyncpa [#allocation3], 0
    // Predicated region
    $region2: #{tpu_custom_call.1} parent=1 // pred_check
      _
    $region3: #{tpu_custom_call.1} parent=1 // pred_check_branch
      %10 = sbr.rel (0) target = $region5
    $region4: #{tpu_custom_call.1} parent=1 // pred_region
      _
    $region5: #{tpu_custom_call.1} parent=1 // pred_fallthru
      _
    // Predicated region
    $region6: #{tpu_custom_call.1} parent=1 // pred_check
      _
    $region7: #{tpu_custom_call.1} parent=1 // pred_check_branch
      %12 = sbr.rel (0) target = $region9
    $region8: #{tpu_custom_call.1} parent=1 // pred_region
      _
    $region9: #{tpu_custom_call.1} parent=1 // pred_fallthru
      _
    // Predicated region
    $region10: #{tpu_custom_call.1} parent=1 // pred_check
      _
    $region11: #{tpu_custom_call.1} parent=1 // pred_check_branch
      %14 = sbr.rel (0) target = $region13
    $region12: #{tpu_custom_call.1} parent=1 // pred_region
      _
    $region13: #{tpu_custom_call.1} parent=1 // pred_fallthru
      _
    %v15 = vlaneseq
    %v16 = vand.u32 %v15, 127
    %v17 = vld [vmem:[%s0] sm:$0xff]
    %v18 = vld [vmem:[%s0 + $0x8] sm:$0xff]
    %v19 = vld [vmem:[%s0 + $0x10] sm:$0xff]
    %v20 = vld [vmem:[%s0 + $0x18] sm:$0xff]
    %v21 = vld [vmem:[%s0 + $0x20] sm:$0xff]
    %v22 = vld [vmem:[%s0 + $0x28] sm:$0xff]
    %v23 = vld [vmem:[%s0 + $0x30] sm:$0xff]
    %v24 = vld [vmem:[%s0 + $0x38] sm:$0xff]
    %v25 = vld [vmem:[%s0 + $0x40] sm:$0xff]
    %v26 = vld [vmem:[%s0 + $0x48] sm:$0xff]
    %v27 = vld [vmem:[%s0 + $0x50] sm:$0xff]
    %v28 = vld [vmem:[%s0 + $0x58] sm:$0xff]
    %v29 = vld [vmem:[%s0 + $0x60] sm:$0xff]
    %v30 = vld [vmem:[%s0 + $0x68] sm:$0xff]
    %v31 = vld [vmem:[%s0 + $0x70] sm:$0xff]
    %v32 = vld [vmem:[%s0 + $0x78] sm:$0xff]
    %33 = vset.pattern.permute.xlu0 0
    %34 = vperm.xlu0 %33, %v17
    %v35 = vpop.permute.xlu0 %34
    %36 = vset.pattern.permute.xlu0 0
    %37 = vperm.xlu0 %36, %v18
    %v38 = vpop.permute.xlu0 %37
    %39 = vset.pattern.permute.xlu0 0
    %40 = vperm.xlu0 %39, %v19
    %v41 = vpop.permute.xlu0 %40
    %42 = vset.pattern.permute.xlu0 0
    %43 = vperm.xlu0 %42, %v20
    %v44 = vpop.permute.xlu0 %43
    %45 = vset.pattern.permute.xlu0 0
    %46 = vperm.xlu0 %45, %v21
    %v47 = vpop.permute.xlu0 %46
    %48 = vset.pattern.permute.xlu0 0
    %49 = vperm.xlu0 %48, %v22
    %v50 = vpop.permute.xlu0 %49
    %51 = vset.pattern.permute.xlu0 0
    %52 = vperm.xlu0 %51, %v23
    %v53 = vpop.permute.xlu0 %52
    %54 = vset.pattern.permute.xlu0 0
    %55 = vperm.xlu0 %54, %v24
    %v56 = vpop.permute.xlu0 %55
    %57 = vset.pattern.permute.xlu0 0
    %58 = vperm.xlu0 %57, %v25
    %v59 = vpop.permute.xlu0 %58
    %60 = vset.pattern.permute.xlu0 0
    %61 = vperm.xlu0 %60, %v26
    %v62 = vpop.permute.xlu0 %61
    %63 = vset.pattern.permute.xlu0 0
    %64 = vperm.xlu0 %63, %v27
    %v65 = vpop.permute.xlu0 %64
    %66 = vset.pattern.permute.xlu0 0
    %67 = vperm.xlu0 %66, %v28
    %v68 = vpop.permute.xlu0 %67
    %69 = vset.pattern.permute.xlu0 0
    %70 = vperm.xlu0 %69, %v29
    %v71 = vpop.permute.xlu0 %70
    %72 = vset.pattern.permute.xlu0 0
    %73 = vperm.xlu0 %72, %v30
    %v74 = vpop.permute.xlu0 %73
    %75 = vset.pattern.permute.xlu0 0
    %76 = vperm.xlu0 %75, %v31
    %v77 = vpop.permute.xlu0 %76
    %78 = vset.pattern.permute.xlu0 0
    %79 = vperm.xlu0 %78, %v32
    %v80 = vpop.permute.xlu0 %79
    %vm81 = vcmp.eq.s32.totalorder %v35, %v16
    %vm82 = vcmp.eq.s32.totalorder %v38, %v16
    %vm83 = vcmp.eq.s32.totalorder %v41, %v16
    %vm84 = vcmp.eq.s32.totalorder %v44, %v16
    %vm85 = vcmp.eq.s32.totalorder %v47, %v16
    %vm86 = vcmp.eq.s32.totalorder %v50, %v16
    %vm87 = vcmp.eq.s32.totalorder %v53, %v16
    %vm88 = vcmp.eq.s32.totalorder %v56, %v16
    %vm89 = vcmp.eq.s32.totalorder %v59, %v16
    %vm90 = vcmp.eq.s32.totalorder %v62, %v16
    %vm91 = vcmp.eq.s32.totalorder %v65, %v16
    %vm92 = vcmp.eq.s32.totalorder %v68, %v16
    %vm93 = vcmp.eq.s32.totalorder %v71, %v16
    %vm94 = vcmp.eq.s32.totalorder %v74, %v16
    %vm95 = vcmp.eq.s32.totalorder %v77, %v16
    %vm96 = vcmp.eq.s32.totalorder %v80, %v16
    %v97 = vsel %vm81, 1, 0
    %v98 = vsel %vm82, 1, 0
    %v99 = vsel %vm83, 1, 0
    %v100 = vsel %vm84, 1, 0
    %v101 = vsel %vm85, 1, 0
    %v102 = vsel %vm86, 1, 0
    %v103 = vsel %vm87, 1, 0
    %v104 = vsel %vm88, 1, 0
    %v105 = vsel %vm89, 1, 0
    %v106 = vsel %vm90, 1, 0
    %v107 = vsel %vm91, 1, 0
    %v108 = vsel %vm92, 1, 0
    %v109 = vsel %vm93, 1, 0
    %v110 = vsel %vm94, 1, 0
    %v111 = vsel %vm95, 1, 0
    %v112 = vsel %vm96, 1, 0
    %v113 = vcvt.s32.f32 %v97
    %v114 = vcvt.s32.f32 %v98
    %v115 = vcvt.s32.f32 %v99
    %v116 = vcvt.s32.f32 %v100
    %v117 = vcvt.s32.f32 %v101
    %v118 = vcvt.s32.f32 %v102
    %v119 = vcvt.s32.f32 %v103
    %v120 = vcvt.s32.f32 %v104
    %v121 = vcvt.s32.f32 %v105
    %v122 = vcvt.s32.f32 %v106
    %v123 = vcvt.s32.f32 %v107
    %v124 = vcvt.s32.f32 %v108
    %v125 = vcvt.s32.f32 %v109
    %v126 = vcvt.s32.f32 %v110
    %v127 = vcvt.s32.f32 %v111
    %v128 = vcvt.s32.f32 %v112
    %v129 = vld [vmem:[%s2] sm:$0xff]
    %v130 = vld [vmem:[%s2 + $0x8] sm:$0xff]
    %v131 = vld [vmem:[%s2 + $0x10] sm:$0xff]
    %v132 = vld [vmem:[%s2 + $0x18] sm:$0xff]
    %v133 = vld [vmem:[%s2 + $0x20] sm:$0xff]
    %v134 = vld [vmem:[%s2 + $0x28] sm:$0xff]
    %v135 = vld [vmem:[%s2 + $0x30] sm:$0xff]
    %v136 = vld [vmem:[%s2 + $0x38] sm:$0xff]
    %vm137 = vcmask 523264
    %v139 = vsel %vm137, %v113, 0
    %v142 = vsel %vm137, %v114, 0
    %v145 = vsel %vm137, %v115, 0
    %v148 = vsel %vm137, %v116, 0
    %v151 = vsel %vm137, %v117, 0
    %v154 = vsel %vm137, %v118, 0
    %v157 = vsel %vm137, %v119, 0
    %v160 = vsel %vm137, %v120, 0
    %v163 = vsel %vm137, %v121, 0
    %v166 = vsel %vm137, %v122, 0
    %v169 = vsel %vm137, %v123, 0
    %v172 = vsel %vm137, %v124, 0
    %v175 = vsel %vm137, %v125, 0
    %v178 = vsel %vm137, %v126, 0
    %v181 = vsel %vm137, %v127, 0
    %v184 = vsel %vm137, %v128, 0
    %186 = vmatprep.subr.mxu0 0.0
    %187 = vmatpush1.msra.mxu0 0.0
    %188 = vmatprep.subr.mxu0 0.0
    %189 = vmatpush1.msra.mxu0 0.0
    %190 = vmatprep.subr.mxu0 0.0
    %191 = vmatpush1.msra.mxu0 0.0
    %192 = vmatprep.subr.mxu0 0.0
    %193 = vmatpush1.msra.mxu0 0.0
    %194 = vmatprep.subr.mxu0 0.0
    %195 = vmatpush1.msra.mxu0 0.0
    %196 = vmatprep.subr.mxu0 0.0
    %197 = vmatpush1.msra.mxu0 0.0
    %198 = vmatprep.subr.mxu0 0.0
    %199 = vmatpush1.msra.mxu0 0.0
    %200 = vmatprep.subr.mxu0 0.0
    %201 = vmatpush1.msra.mxu0 0.0
    %202 = vmatprep.subr.mxu0 0.0
    %v203 = vand.u32 %v136, 4294901760
    %204 = vmatpush1.msra.mxu0 %v203
    %205 = vmatprep.subr.mxu0 0.0
    %v206 = vand.u32 %v135, 4294901760
    %207 = vmatpush1.msra.mxu0 %v206
    %208 = vmatprep.subr.mxu0 0.0
    %v209 = vand.u32 %v134, 4294901760
    %210 = vmatpush1.msra.mxu0 %v209
    %211 = vmatprep.subr.mxu0 0.0
    %v212 = vand.u32 %v133, 4294901760
    %213 = vmatpush1.msra.mxu0 %v212
    %214 = vmatprep.subr.mxu0 0.0
    %v215 = vand.u32 %v132, 4294901760
    %216 = vmatpush1.msra.mxu0 %v215
    %217 = vmatprep.subr.mxu0 0.0
    %v218 = vand.u32 %v131, 4294901760
    %219 = vmatpush1.msra.mxu0 %v218
    %220 = vmatprep.subr.mxu0 0.0
    %v221 = vand.u32 %v130, 4294901760
    %222 = vmatpush1.msra.mxu0 %v221
    %223 = vmatprep.subr.mxu0 0.0
    %v224 = vand.u32 %v129, 4294901760
    %225 = vmatpush1.msra.mxu0 %v224
    %226 = vmatprep.subr.mxu0 0.0
    %227 = vmatpush2.msra.mxu0 0.0
    %228 = vmatprep.subr.mxu0 0.0
    %229 = vmatpush2.msra.mxu0 0.0
    %230 = vmatprep.subr.mxu0 0.0
    %231 = vmatpush2.msra.mxu0 0.0
    %232 = vmatprep.subr.mxu0 0.0
    %233 = vmatpush2.msra.mxu0 0.0
    %234 = vmatprep.subr.mxu0 0.0
    %235 = vmatpush2.msra.mxu0 0.0
    %236 = vmatprep.subr.mxu0 0.0
    %237 = vmatpush2.msra.mxu0 0.0
    %238 = vmatprep.subr.mxu0 0.0
    %239 = vmatpush2.msra.mxu0 0.0
    %240 = vmatprep.subr.mxu0 0.0
    %241 = vmatpush2.msra.mxu0 0.0
    %242 = vmatprep.subr.mxu0 0.0
    %243 = vmatpush2.msra.mxu0 0.0
    %244 = vmatprep.subr.mxu0 0.0
    %245 = vmatpush2.msra.mxu0 0.0
    %246 = vmatprep.subr.mxu0 0.0
    %247 = vmatpush2.msra.mxu0 0.0
    %248 = vmatprep.subr.mxu0 0.0
    %249 = vmatpush2.msra.mxu0 0.0
    %250 = vmatprep.subr.mxu0 0.0
    %251 = vmatpush2.msra.mxu0 0.0
    %252 = vmatprep.subr.mxu0 0.0
    %253 = vmatpush2.msra.mxu0 0.0
    %254 = vmatprep.subr.mxu0 0.0
    %255 = vmatpush2.msra.mxu0 0.0
    %256 = vmatprep.subr.mxu0 0.0
    %257 = vmatpush2.msra.mxu0 0.0
    %258 = vmatprep.mubr.f32.mxu0 0.0
    %v259 = vand.u32 %v139, 4294901760
    %v260 = vsub.f32 %v139, %v259
    %v261 = vand.u32 %v260, 4294901760
    %v262 = vsub.f32 %v260, %v261
    %v263 = vand.u32 %v262, 4294901760
    %264 = vmatmul.mubr.f32.gmra.mxu0 %v263
    %v265 = vpop.f32.mrf.mxu0
    %v266 = vadd.f32 0.0, %v265
    %v267 = vpop.f32.mrf.mxu0
    %268 = vmatprep.mubr.f32.mxu0 0.0
    %v269 = vand.u32 %v142, 4294901760
    %v270 = vsub.f32 %v142, %v269
    %v271 = vand.u32 %v270, 4294901760
    %v272 = vsub.f32 %v270, %v271
    %v273 = vand.u32 %v272, 4294901760
    %274 = vmatmul.mubr.f32.gmra.mxu0 %v273
    %v275 = vpop.f32.mrf.mxu0
    %v276 = vadd.f32 0.0, %v275
    %v277 = vpop.f32.mrf.mxu0
    %278 = vmatprep.mubr.f32.mxu0 0.0
    %v279 = vand.u32 %v145, 4294901760
    %v280 = vsub.f32 %v145, %v279
    %v281 = vand.u32 %v280, 4294901760
    %v282 = vsub.f32 %v280, %v281
    %v283 = vand.u32 %v282, 4294901760
    %284 = vmatmul.mubr.f32.gmra.mxu0 %v283
    %v285 = vpop.f32.mrf.mxu0
    %v286 = vadd.f32 0.0, %v285
    %v287 = vpop.f32.mrf.mxu0
    %288 = vmatprep.mubr.f32.mxu0 0.0
    %v289 = vand.u32 %v148, 4294901760
    %v290 = vsub.f32 %v148, %v289
    %v291 = vand.u32 %v290, 4294901760
    %v292 = vsub.f32 %v290, %v291
    %v293 = vand.u32 %v292, 4294901760
    %294 = vmatmul.mubr.f32.gmra.mxu0 %v293
    %v295 = vpop.f32.mrf.mxu0
    %v296 = vadd.f32 0.0, %v295
    %v297 = vpop.f32.mrf.mxu0
    %298 = vmatprep.mubr.f32.mxu0 0.0
    %v299 = vand.u32 %v151, 4294901760
    %v300 = vsub.f32 %v151, %v299
    %v301 = vand.u32 %v300, 4294901760
    %v302 = vsub.f32 %v300, %v301
    %v303 = vand.u32 %v302, 4294901760
    %304 = vmatmul.mubr.f32.gmra.mxu0 %v303
    %v305 = vpop.f32.mrf.mxu0
    %v306 = vadd.f32 0.0, %v305
    %v307 = vpop.f32.mrf.mxu0
    %308 = vmatprep.mubr.f32.mxu0 0.0
    %v309 = vand.u32 %v154, 4294901760
    %v310 = vsub.f32 %v154, %v309
    %v311 = vand.u32 %v310, 4294901760
    %v312 = vsub.f32 %v310, %v311
    %v313 = vand.u32 %v312, 4294901760
    %314 = vmatmul.mubr.f32.gmra.mxu0 %v313
    %v315 = vpop.f32.mrf.mxu0
    %v316 = vadd.f32 0.0, %v315
    %v317 = vpop.f32.mrf.mxu0
    %318 = vmatprep.mubr.f32.mxu0 0.0
    %v319 = vand.u32 %v157, 4294901760
    %v320 = vsub.f32 %v157, %v319
    %v321 = vand.u32 %v320, 4294901760
    %v322 = vsub.f32 %v320, %v321
    %v323 = vand.u32 %v322, 4294901760
    %324 = vmatmul.mubr.f32.gmra.mxu0 %v323
    %v325 = vpop.f32.mrf.mxu0
    %v326 = vadd.f32 0.0, %v325
    %v327 = vpop.f32.mrf.mxu0
    %328 = vmatprep.mubr.f32.mxu0 0.0
    %v329 = vand.u32 %v160, 4294901760
    %v330 = vsub.f32 %v160, %v329
    %v331 = vand.u32 %v330, 4294901760
    %v332 = vsub.f32 %v330, %v331
    %v333 = vand.u32 %v332, 4294901760
    %334 = vmatmul.mubr.f32.gmra.mxu0 %v333
    %v335 = vpop.f32.mrf.mxu0
    %v336 = vadd.f32 0.0, %v335
    %v337 = vpop.f32.mrf.mxu0
    %338 = vmatprep.mubr.f32.mxu0 0.0
    %v339 = vand.u32 %v163, 4294901760
    %v340 = vsub.f32 %v163, %v339
    %v341 = vand.u32 %v340, 4294901760
    %v342 = vsub.f32 %v340, %v341
    %v343 = vand.u32 %v342, 4294901760
    %344 = vmatmul.mubr.f32.gmra.mxu0 %v343
    %v345 = vpop.f32.mrf.mxu0
    %v346 = vadd.f32 0.0, %v345
    %v347 = vpop.f32.mrf.mxu0
    %348 = vmatprep.mubr.f32.mxu0 0.0
    %v349 = vand.u32 %v166, 4294901760
    %v350 = vsub.f32 %v166, %v349
    %v351 = vand.u32 %v350, 4294901760
    %v352 = vsub.f32 %v350, %v351
    %v353 = vand.u32 %v352, 4294901760
    %354 = vmatmul.mubr.f32.gmra.mxu0 %v353
    %v355 = vpop.f32.mrf.mxu0
    %v356 = vadd.f32 0.0, %v355
    %v357 = vpop.f32.mrf.mxu0
    %358 = vmatprep.mubr.f32.mxu0 0.0
    %v359 = vand.u32 %v169, 4294901760
    %v360 = vsub.f32 %v169, %v359
    %v361 = vand.u32 %v360, 4294901760
    %v362 = vsub.f32 %v360, %v361
    %v363 = vand.u32 %v362, 4294901760
    %364 = vmatmul.mubr.f32.gmra.mxu0 %v363
    %v365 = vpop.f32.mrf.mxu0
    %v366 = vadd.f32 0.0, %v365
    %v367 = vpop.f32.mrf.mxu0
    %368 = vmatprep.mubr.f32.mxu0 0.0
    %v369 = vand.u32 %v172, 4294901760
    %v370 = vsub.f32 %v172, %v369
    %v371 = vand.u32 %v370, 4294901760
    %v372 = vsub.f32 %v370, %v371
    %v373 = vand.u32 %v372, 4294901760
    %374 = vmatmul.mubr.f32.gmra.mxu0 %v373
    %v375 = vpop.f32.mrf.mxu0
    %v376 = vadd.f32 0.0, %v375
    %v377 = vpop.f32.mrf.mxu0
    %378 = vmatprep.mubr.f32.mxu0 0.0
    %v379 = vand.u32 %v175, 4294901760
    %v380 = vsub.f32 %v175, %v379
    %v381 = vand.u32 %v380, 4294901760
    %v382 = vsub.f32 %v380, %v381
    %v383 = vand.u32 %v382, 4294901760
    %384 = vmatmul.mubr.f32.gmra.mxu0 %v383
    %v385 = vpop.f32.mrf.mxu0
    %v386 = vadd.f32 0.0, %v385
    %v387 = vpop.f32.mrf.mxu0
    %388 = vmatprep.mubr.f32.mxu0 0.0
    %v389 = vand.u32 %v178, 4294901760
    %v390 = vsub.f32 %v178, %v389
    %v391 = vand.u32 %v390, 4294901760
    %v392 = vsub.f32 %v390, %v391
    %v393 = vand.u32 %v392, 4294901760
    %394 = vmatmul.mubr.f32.gmra.mxu0 %v393
    %v395 = vpop.f32.mrf.mxu0
    %v396 = vadd.f32 0.0, %v395
    %v397 = vpop.f32.mrf.mxu0
    %398 = vmatprep.mubr.f32.mxu0 0.0
    %v399 = vand.u32 %v181, 4294901760
    %v400 = vsub.f32 %v181, %v399
    %v401 = vand.u32 %v400, 4294901760
    %v402 = vsub.f32 %v400, %v401
    %v403 = vand.u32 %v402, 4294901760
    %404 = vmatmul.mubr.f32.gmra.mxu0 %v403
    %v405 = vpop.f32.mrf.mxu0
    %v406 = vadd.f32 0.0, %v405
    %v407 = vpop.f32.mrf.mxu0
    %408 = vmatprep.mubr.f32.mxu0 0.0
    %v409 = vand.u32 %v184, 4294901760
    %v410 = vsub.f32 %v184, %v409
    %v411 = vand.u32 %v410, 4294901760
    %v412 = vsub.f32 %v410, %v411
    %v413 = vand.u32 %v412, 4294901760
    %414 = vmatmul.mubr.f32.gmra.mxu0 %v413
    %v415 = vpop.f32.mrf.mxu0
    %v416 = vadd.f32 0.0, %v415
    %v417 = vpop.f32.mrf.mxu0
    %418 = vdwg.mxu0
    %419 = vmatprep.subr.mxu0 0.0
    %420 = vmatpush1.msra.mxu0 0.0
    %421 = vmatprep.subr.mxu0 0.0
    %422 = vmatpush1.msra.mxu0 0.0
    %423 = vmatprep.subr.mxu0 0.0
    %424 = vmatpush1.msra.mxu0 0.0
    %425 = vmatprep.subr.mxu0 0.0
    %426 = vmatpush1.msra.mxu0 0.0
    %427 = vmatprep.subr.mxu0 0.0
    %428 = vmatpush1.msra.mxu0 0.0
    %429 = vmatprep.subr.mxu0 0.0
    %430 = vmatpush1.msra.mxu0 0.0
    %431 = vmatprep.subr.mxu0 0.0
    %432 = vmatpush1.msra.mxu0 0.0
    %433 = vmatprep.subr.mxu0 0.0
    %434 = vmatpush1.msra.mxu0 0.0
    %435 = vmatprep.subr.mxu0 0.0
    %v436 = vand.u32 %v136, 4294901760
    %v437 = vsub.f32 %v136, %v436
    %v438 = vand.u32 %v437, 4294901760
    %v439 = vsub.f32 %v437, %v438
    %v440 = vand.u32 %v439, 4294901760
    %441 = vmatpush1.msra.mxu0 %v440
    %442 = vmatprep.subr.mxu0 0.0
    %v443 = vand.u32 %v135, 4294901760
    %v444 = vsub.f32 %v135, %v443
    %v445 = vand.u32 %v444, 4294901760
    %v446 = vsub.f32 %v444, %v445
    %v447 = vand.u32 %v446, 4294901760
    %448 = vmatpush1.msra.mxu0 %v447
    %449 = vmatprep.subr.mxu0 0.0
    %v450 = vand.u32 %v134, 4294901760
    %v451 = vsub.f32 %v134, %v450
    %v452 = vand.u32 %v451, 4294901760
    %v453 = vsub.f32 %v451, %v452
    %v454 = vand.u32 %v453, 4294901760
    %455 = vmatpush1.msra.mxu0 %v454
    %456 = vmatprep.subr.mxu0 0.0
    %v457 = vand.u32 %v133, 4294901760
    %v458 = vsub.f32 %v133, %v457
    %v459 = vand.u32 %v458, 4294901760
    %v460 = vsub.f32 %v458, %v459
    %v461 = vand.u32 %v460, 4294901760
    %462 = vmatpush1.msra.mxu0 %v461
    %463 = vmatprep.subr.mxu0 0.0
    %v464 = vand.u32 %v132, 4294901760
    %v465 = vsub.f32 %v132, %v464
    %v466 = vand.u32 %v465, 4294901760
    %v467 = vsub.f32 %v465, %v466
    %v468 = vand.u32 %v467, 4294901760
    %469 = vmatpush1.msra.mxu0 %v468
    %470 = vmatprep.subr.mxu0 0.0
    %v471 = vand.u32 %v131, 4294901760
    %v472 = vsub.f32 %v131, %v471
    %v473 = vand.u32 %v472, 4294901760
    %v474 = vsub.f32 %v472, %v473
    %v475 = vand.u32 %v474, 4294901760
    %476 = vmatpush1.msra.mxu0 %v475
    %477 = vmatprep.subr.mxu0 0.0
    %v478 = vand.u32 %v130, 4294901760
    %v479 = vsub.f32 %v130, %v478
    %v480 = vand.u32 %v479, 4294901760
    %v481 = vsub.f32 %v479, %v480
    %v482 = vand.u32 %v481, 4294901760
    %483 = vmatpush1.msra.mxu0 %v482
    %484 = vmatprep.subr.mxu0 0.0
    %v485 = vand.u32 %v129, 4294901760
    %v486 = vsub.f32 %v129, %v485
    %v487 = vand.u32 %v486, 4294901760
    %v488 = vsub.f32 %v486, %v487
    %v489 = vand.u32 %v488, 4294901760
    %490 = vmatpush1.msra.mxu0 %v489
    %491 = vmatprep.subr.mxu0 0.0
    %492 = vmatpush2.msra.mxu0 0.0
    %493 = vmatprep.subr.mxu0 0.0
    %494 = vmatpush2.msra.mxu0 0.0
    %495 = vmatprep.subr.mxu0 0.0
    %496 = vmatpush2.msra.mxu0 0.0
    %497 = vmatprep.subr.mxu0 0.0
    %498 = vmatpush2.msra.mxu0 0.0
    %499 = vmatprep.subr.mxu0 0.0
    %500 = vmatpush2.msra.mxu0 0.0
    %501 = vmatprep.subr.mxu0 0.0
    %502 = vmatpush2.msra.mxu0 0.0
    %503 = vmatprep.subr.mxu0 0.0
    %504 = vmatpush2.msra.mxu0 0.0
    %505 = vmatprep.subr.mxu0 0.0
    %506 = vmatpush2.msra.mxu0 0.0
    %507 = vmatprep.subr.mxu0 0.0
    %508 = vmatpush2.msra.mxu0 0.0
    %509 = vmatprep.subr.mxu0 0.0
    %510 = vmatpush2.msra.mxu0 0.0
    %511 = vmatprep.subr.mxu0 0.0
    %512 = vmatpush2.msra.mxu0 0.0
    %513 = vmatprep.subr.mxu0 0.0
    %514 = vmatpush2.msra.mxu0 0.0
    %515 = vmatprep.subr.mxu0 0.0
    %516 = vmatpush2.msra.mxu0 0.0
    %517 = vmatprep.subr.mxu0 0.0
    %518 = vmatpush2.msra.mxu0 0.0
    %519 = vmatprep.subr.mxu0 0.0
    %520 = vmatpush2.msra.mxu0 0.0
    %521 = vmatprep.subr.mxu0 0.0
    %522 = vmatpush2.msra.mxu0 0.0
    %523 = vmatprep.mubr.f32.mxu0 0.0
    %v524 = vand.u32 %v139, 4294901760
    %525 = vmatmul.mubr.f32.gmra.mxu0 %v524
    %v526 = vpop.f32.mrf.mxu0
    %v527 = vadd.f32 %v266, %v526
    %v528 = vpop.f32.mrf.mxu0
    %529 = vmatprep.mubr.f32.mxu0 0.0
    %v530 = vand.u32 %v142, 4294901760
    %531 = vmatmul.mubr.f32.gmra.mxu0 %v530
    %v532 = vpop.f32.mrf.mxu0
    %v533 = vadd.f32 %v276, %v532
    %v534 = vpop.f32.mrf.mxu0
    %535 = vmatprep.mubr.f32.mxu0 0.0
    %v536 = vand.u32 %v145, 4294901760
    %537 = vmatmul.mubr.f32.gmra.mxu0 %v536
    %v538 = vpop.f32.mrf.mxu0
    %v539 = vadd.f32 %v286, %v538
    %v540 = vpop.f32.mrf.mxu0
    %541 = vmatprep.mubr.f32.mxu0 0.0
    %v542 = vand.u32 %v148, 4294901760
    %543 = vmatmul.mubr.f32.gmra.mxu0 %v542
    %v544 = vpop.f32.mrf.mxu0
    %v545 = vadd.f32 %v296, %v544
    %v546 = vpop.f32.mrf.mxu0
    %547 = vmatprep.mubr.f32.mxu0 0.0
    %v548 = vand.u32 %v151, 4294901760
    %549 = vmatmul.mubr.f32.gmra.mxu0 %v548
    %v550 = vpop.f32.mrf.mxu0
    %v551 = vadd.f32 %v306, %v550
    %v552 = vpop.f32.mrf.mxu0
    %553 = vmatprep.mubr.f32.mxu0 0.0
    %v554 = vand.u32 %v154, 4294901760
    %555 = vmatmul.mubr.f32.gmra.mxu0 %v554
    %v556 = vpop.f32.mrf.mxu0
    %v557 = vadd.f32 %v316, %v556
    %v558 = vpop.f32.mrf.mxu0
    %559 = vmatprep.mubr.f32.mxu0 0.0
    %v560 = vand.u32 %v157, 4294901760
    %561 = vmatmul.mubr.f32.gmra.mxu0 %v560
    %v562 = vpop.f32.mrf.mxu0
    %v563 = vadd.f32 %v326, %v562
    %v564 = vpop.f32.mrf.mxu0
    %565 = vmatprep.mubr.f32.mxu0 0.0
    %v566 = vand.u32 %v160, 4294901760
    %567 = vmatmul.mubr.f32.gmra.mxu0 %v566
    %v568 = vpop.f32.mrf.mxu0
    %v569 = vadd.f32 %v336, %v568
    %v570 = vpop.f32.mrf.mxu0
    %571 = vmatprep.mubr.f32.mxu0 0.0
    %v572 = vand.u32 %v163, 4294901760
    %573 = vmatmul.mubr.f32.gmra.mxu0 %v572
    %v574 = vpop.f32.mrf.mxu0
    %v575 = vadd.f32 %v346, %v574
    %v576 = vpop.f32.mrf.mxu0
    %577 = vmatprep.mubr.f32.mxu0 0.0
    %v578 = vand.u32 %v166, 4294901760
    %579 = vmatmul.mubr.f32.gmra.mxu0 %v578
    %v580 = vpop.f32.mrf.mxu0
    %v581 = vadd.f32 %v356, %v580
    %v582 = vpop.f32.mrf.mxu0
    %583 = vmatprep.mubr.f32.mxu0 0.0
    %v584 = vand.u32 %v169, 4294901760
    %585 = vmatmul.mubr.f32.gmra.mxu0 %v584
    %v586 = vpop.f32.mrf.mxu0
    %v587 = vadd.f32 %v366, %v586
    %v588 = vpop.f32.mrf.mxu0
    %589 = vmatprep.mubr.f32.mxu0 0.0
    %v590 = vand.u32 %v172, 4294901760
    %591 = vmatmul.mubr.f32.gmra.mxu0 %v590
    %v592 = vpop.f32.mrf.mxu0
    %v593 = vadd.f32 %v376, %v592
    %v594 = vpop.f32.mrf.mxu0
    %595 = vmatprep.mubr.f32.mxu0 0.0
    %v596 = vand.u32 %v175, 4294901760
    %597 = vmatmul.mubr.f32.gmra.mxu0 %v596
    %v598 = vpop.f32.mrf.mxu0
    %v599 = vadd.f32 %v386, %v598
    %v600 = vpop.f32.mrf.mxu0
    %601 = vmatprep.mubr.f32.mxu0 0.0
    %v602 = vand.u32 %v178, 4294901760
    %603 = vmatmul.mubr.f32.gmra.mxu0 %v602
    %v604 = vpop.f32.mrf.mxu0
    %v605 = vadd.f32 %v396, %v604
    %v606 = vpop.f32.mrf.mxu0
    %607 = vmatprep.mubr.f32.mxu0 0.0
    %v608 = vand.u32 %v181, 4294901760
    %609 = vmatmul.mubr.f32.gmra.mxu0 %v608
    %v610 = vpop.f32.mrf.mxu0
    %v611 = vadd.f32 %v406, %v610
    %v612 = vpop.f32.mrf.mxu0
    %613 = vmatprep.mubr.f32.mxu0 0.0
    %v614 = vand.u32 %v184, 4294901760
    %615 = vmatmul.mubr.f32.gmra.mxu0 %v614
    %v616 = vpop.f32.mrf.mxu0
    %v617 = vadd.f32 %v416, %v616
    %v618 = vpop.f32.mrf.mxu0
    %619 = vdwg.mxu0
    %620 = vmatprep.subr.mxu0 0.0
    %621 = vmatpush1.msra.mxu0 0.0
    %622 = vmatprep.subr.mxu0 0.0
    %623 = vmatpush1.msra.mxu0 0.0
    %624 = vmatprep.subr.mxu0 0.0
    %625 = vmatpush1.msra.mxu0 0.0
    %626 = vmatprep.subr.mxu0 0.0
    %627 = vmatpush1.msra.mxu0 0.0
    %628 = vmatprep.subr.mxu0 0.0
    %629 = vmatpush1.msra.mxu0 0.0
    %630 = vmatprep.subr.mxu0 0.0
    %631 = vmatpush1.msra.mxu0 0.0
    %632 = vmatprep.subr.mxu0 0.0
    %633 = vmatpush1.msra.mxu0 0.0
    %634 = vmatprep.subr.mxu0 0.0
    %635 = vmatpush1.msra.mxu0 0.0
    %636 = vmatprep.subr.mxu0 0.0
    %v637 = vand.u32 %v136, 4294901760
    %v638 = vsub.f32 %v136, %v637
    %639 = vmatpush1.msra.mxu0 %v638
    %640 = vmatprep.subr.mxu0 0.0
    %v641 = vand.u32 %v135, 4294901760
    %v642 = vsub.f32 %v135, %v641
    %643 = vmatpush1.msra.mxu0 %v642
    %644 = vmatprep.subr.mxu0 0.0
    %v645 = vand.u32 %v134, 4294901760
    %v646 = vsub.f32 %v134, %v645
    %647 = vmatpush1.msra.mxu0 %v646
    %648 = vmatprep.subr.mxu0 0.0
    %v649 = vand.u32 %v133, 4294901760
    %v650 = vsub.f32 %v133, %v649
    %651 = vmatpush1.msra.mxu0 %v650
    %652 = vmatprep.subr.mxu0 0.0
    %v653 = vand.u32 %v132, 4294901760
    %v654 = vsub.f32 %v132, %v653
    %655 = vmatpush1.msra.mxu0 %v654
    %656 = vmatprep.subr.mxu0 0.0
    %v657 = vand.u32 %v131, 4294901760
    %v658 = vsub.f32 %v131, %v657
    %659 = vmatpush1.msra.mxu0 %v658
    %660 = vmatprep.subr.mxu0 0.0
    %v661 = vand.u32 %v130, 4294901760
    %v662 = vsub.f32 %v130, %v661
    %663 = vmatpush1.msra.mxu0 %v662
    %664 = vmatprep.subr.mxu0 0.0
    %v665 = vand.u32 %v129, 4294901760
    %v666 = vsub.f32 %v129, %v665
    %667 = vmatpush1.msra.mxu0 %v666
    %668 = vmatprep.subr.mxu0 0.0
    %669 = vmatpush2.msra.mxu0 0.0
    %670 = vmatprep.subr.mxu0 0.0
    %671 = vmatpush2.msra.mxu0 0.0
    %672 = vmatprep.subr.mxu0 0.0
    %673 = vmatpush2.msra.mxu0 0.0
    %674 = vmatprep.subr.mxu0 0.0
    %675 = vmatpush2.msra.mxu0 0.0
    %676 = vmatprep.subr.mxu0 0.0
    %677 = vmatpush2.msra.mxu0 0.0
    %678 = vmatprep.subr.mxu0 0.0
    %679 = vmatpush2.msra.mxu0 0.0
    %680 = vmatprep.subr.mxu0 0.0
    %681 = vmatpush2.msra.mxu0 0.0
    %682 = vmatprep.subr.mxu0 0.0
    %683 = vmatpush2.msra.mxu0 0.0
    %684 = vmatprep.subr.mxu0 0.0
    %685 = vmatpush2.msra.mxu0 0.0
    %686 = vmatprep.subr.mxu0 0.0
    %687 = vmatpush2.msra.mxu0 0.0
    %688 = vmatprep.subr.mxu0 0.0
    %689 = vmatpush2.msra.mxu0 0.0
    %690 = vmatprep.subr.mxu0 0.0
    %691 = vmatpush2.msra.mxu0 0.0
    %692 = vmatprep.subr.mxu0 0.0
    %693 = vmatpush2.msra.mxu0 0.0
    %694 = vmatprep.subr.mxu0 0.0
    %695 = vmatpush2.msra.mxu0 0.0
    %696 = vmatprep.subr.mxu0 0.0
    %697 = vmatpush2.msra.mxu0 0.0
    %698 = vmatprep.subr.mxu0 0.0
    %699 = vmatpush2.msra.mxu0 0.0
    %700 = vmatprep.mubr.f32.mxu0 0.0
    %v701 = vand.u32 %v139, 4294901760
    %v702 = vsub.f32 %v139, %v701
    %703 = vmatmul.mubr.f32.gmra.mxu0 %v702
    %v704 = vpop.f32.mrf.mxu0
    %v705 = vadd.f32 %v527, %v704
    %v706 = vpop.f32.mrf.mxu0
    %707 = vmatprep.mubr.f32.mxu0 0.0
    %v708 = vand.u32 %v142, 4294901760
    %v709 = vsub.f32 %v142, %v708
    %710 = vmatmul.mubr.f32.gmra.mxu0 %v709
    %v711 = vpop.f32.mrf.mxu0
    %v712 = vadd.f32 %v533, %v711
    %v713 = vpop.f32.mrf.mxu0
    %714 = vmatprep.mubr.f32.mxu0 0.0
    %v715 = vand.u32 %v145, 4294901760
    %v716 = vsub.f32 %v145, %v715
    %717 = vmatmul.mubr.f32.gmra.mxu0 %v716
    %v718 = vpop.f32.mrf.mxu0
    %v719 = vadd.f32 %v539, %v718
    %v720 = vpop.f32.mrf.mxu0
    %721 = vmatprep.mubr.f32.mxu0 0.0
    %v722 = vand.u32 %v148, 4294901760
    %v723 = vsub.f32 %v148, %v722
    %724 = vmatmul.mubr.f32.gmra.mxu0 %v723
    %v725 = vpop.f32.mrf.mxu0
    %v726 = vadd.f32 %v545, %v725
    %v727 = vpop.f32.mrf.mxu0
    %728 = vmatprep.mubr.f32.mxu0 0.0
    %v729 = vand.u32 %v151, 4294901760
    %v730 = vsub.f32 %v151, %v729
    %731 = vmatmul.mubr.f32.gmra.mxu0 %v730
    %v732 = vpop.f32.mrf.mxu0
    %v733 = vadd.f32 %v551, %v732
    %v734 = vpop.f32.mrf.mxu0
    %735 = vmatprep.mubr.f32.mxu0 0.0
    %v736 = vand.u32 %v154, 4294901760
    %v737 = vsub.f32 %v154, %v736
    %738 = vmatmul.mubr.f32.gmra.mxu0 %v737
    %v739 = vpop.f32.mrf.mxu0
    %v740 = vadd.f32 %v557, %v739
    %v741 = vpop.f32.mrf.mxu0
    %742 = vmatprep.mubr.f32.mxu0 0.0
    %v743 = vand.u32 %v157, 4294901760
    %v744 = vsub.f32 %v157, %v743
    %745 = vmatmul.mubr.f32.gmra.mxu0 %v744
    %v746 = vpop.f32.mrf.mxu0
    %v747 = vadd.f32 %v563, %v746
    %v748 = vpop.f32.mrf.mxu0
    %749 = vmatprep.mubr.f32.mxu0 0.0
    %v750 = vand.u32 %v160, 4294901760
    %v751 = vsub.f32 %v160, %v750
    %752 = vmatmul.mubr.f32.gmra.mxu0 %v751
    %v753 = vpop.f32.mrf.mxu0
    %v754 = vadd.f32 %v569, %v753
    %v755 = vpop.f32.mrf.mxu0
    %756 = vmatprep.mubr.f32.mxu0 0.0
    %v757 = vand.u32 %v163, 4294901760
    %v758 = vsub.f32 %v163, %v757
    %759 = vmatmul.mubr.f32.gmra.mxu0 %v758
    %v760 = vpop.f32.mrf.mxu0
    %v761 = vadd.f32 %v575, %v760
    %v762 = vpop.f32.mrf.mxu0
    %763 = vmatprep.mubr.f32.mxu0 0.0
    %v764 = vand.u32 %v166, 4294901760
    %v765 = vsub.f32 %v166, %v764
    %766 = vmatmul.mubr.f32.gmra.mxu0 %v765
    %v767 = vpop.f32.mrf.mxu0
    %v768 = vadd.f32 %v581, %v767
    %v769 = vpop.f32.mrf.mxu0
    %770 = vmatprep.mubr.f32.mxu0 0.0
    %v771 = vand.u32 %v169, 4294901760
    %v772 = vsub.f32 %v169, %v771
    %773 = vmatmul.mubr.f32.gmra.mxu0 %v772
    %v774 = vpop.f32.mrf.mxu0
    %v775 = vadd.f32 %v587, %v774
    %v776 = vpop.f32.mrf.mxu0
    %777 = vmatprep.mubr.f32.mxu0 0.0
    %v778 = vand.u32 %v172, 4294901760
    %v779 = vsub.f32 %v172, %v778
    %780 = vmatmul.mubr.f32.gmra.mxu0 %v779
    %v781 = vpop.f32.mrf.mxu0
    %v782 = vadd.f32 %v593, %v781
    %v783 = vpop.f32.mrf.mxu0
    %784 = vmatprep.mubr.f32.mxu0 0.0
    %v785 = vand.u32 %v175, 4294901760
    %v786 = vsub.f32 %v175, %v785
    %787 = vmatmul.mubr.f32.gmra.mxu0 %v786
    %v788 = vpop.f32.mrf.mxu0
    %v789 = vadd.f32 %v599, %v788
    %v790 = vpop.f32.mrf.mxu0
    %791 = vmatprep.mubr.f32.mxu0 0.0
    %v792 = vand.u32 %v178, 4294901760
    %v793 = vsub.f32 %v178, %v792
    %794 = vmatmul.mubr.f32.gmra.mxu0 %v793
    %v795 = vpop.f32.mrf.mxu0
    %v796 = vadd.f32 %v605, %v795
    %v797 = vpop.f32.mrf.mxu0
    %798 = vmatprep.mubr.f32.mxu0 0.0
    %v799 = vand.u32 %v181, 4294901760
    %v800 = vsub.f32 %v181, %v799
    %801 = vmatmul.mubr.f32.gmra.mxu0 %v800
    %v802 = vpop.f32.mrf.mxu0
    %v803 = vadd.f32 %v611, %v802
    %v804 = vpop.f32.mrf.mxu0
    %805 = vmatprep.mubr.f32.mxu0 0.0
    %v806 = vand.u32 %v184, 4294901760
    %v807 = vsub.f32 %v184, %v806
    %808 = vmatmul.mubr.f32.gmra.mxu0 %v807
    %v809 = vpop.f32.mrf.mxu0
    %v810 = vadd.f32 %v617, %v809
    %v811 = vpop.f32.mrf.mxu0
    %812 = vdwg.mxu0
    %813 = vmatprep.subr.mxu0 0.0
    %814 = vmatpush1.msra.mxu0 0.0
    %815 = vmatprep.subr.mxu0 0.0
    %816 = vmatpush1.msra.mxu0 0.0
    %817 = vmatprep.subr.mxu0 0.0
    %818 = vmatpush1.msra.mxu0 0.0
    %819 = vmatprep.subr.mxu0 0.0
    %820 = vmatpush1.msra.mxu0 0.0
    %821 = vmatprep.subr.mxu0 0.0
    %822 = vmatpush1.msra.mxu0 0.0
    %823 = vmatprep.subr.mxu0 0.0
    %824 = vmatpush1.msra.mxu0 0.0
    %825 = vmatprep.subr.mxu0 0.0
    %826 = vmatpush1.msra.mxu0 0.0
    %827 = vmatprep.subr.mxu0 0.0
    %828 = vmatpush1.msra.mxu0 0.0
    %829 = vmatprep.subr.mxu0 0.0
    %v830 = vand.u32 %v136, 4294901760
    %831 = vmatpush1.msra.mxu0 %v830
    %832 = vmatprep.subr.mxu0 0.0
    %v833 = vand.u32 %v135, 4294901760
    %834 = vmatpush1.msra.mxu0 %v833
    %835 = vmatprep.subr.mxu0 0.0
    %v836 = vand.u32 %v134, 4294901760
    %837 = vmatpush1.msra.mxu0 %v836
    %838 = vmatprep.subr.mxu0 0.0
    %v839 = vand.u32 %v133, 4294901760
    %840 = vmatpush1.msra.mxu0 %v839
    %841 = vmatprep.subr.mxu0 0.0
    %v842 = vand.u32 %v132, 4294901760
    %843 = vmatpush1.msra.mxu0 %v842
    %844 = vmatprep.subr.mxu0 0.0
    %v845 = vand.u32 %v131, 4294901760
    %846 = vmatpush1.msra.mxu0 %v845
    %847 = vmatprep.subr.mxu0 0.0
    %v848 = vand.u32 %v130, 4294901760
    %849 = vmatpush1.msra.mxu0 %v848
    %850 = vmatprep.subr.mxu0 0.0
    %v851 = vand.u32 %v129, 4294901760
    %852 = vmatpush1.msra.mxu0 %v851
    %853 = vmatprep.subr.mxu0 0.0
    %854 = vmatpush2.msra.mxu0 0.0
    %855 = vmatprep.subr.mxu0 0.0
    %856 = vmatpush2.msra.mxu0 0.0
    %857 = vmatprep.subr.mxu0 0.0
    %858 = vmatpush2.msra.mxu0 0.0
    %859 = vmatprep.subr.mxu0 0.0
    %860 = vmatpush2.msra.mxu0 0.0
    %861 = vmatprep.subr.mxu0 0.0
    %862 = vmatpush2.msra.mxu0 0.0
    %863 = vmatprep.subr.mxu0 0.0
    %864 = vmatpush2.msra.mxu0 0.0
    %865 = vmatprep.subr.mxu0 0.0
    %866 = vmatpush2.msra.mxu0 0.0
    %867 = vmatprep.subr.mxu0 0.0
    %868 = vmatpush2.msra.mxu0 0.0
    %869 = vmatprep.subr.mxu0 0.0
    %870 = vmatpush2.msra.mxu0 0.0
    %871 = vmatprep.subr.mxu0 0.0
    %872 = vmatpush2.msra.mxu0 0.0
    %873 = vmatprep.subr.mxu0 0.0
    %874 = vmatpush2.msra.mxu0 0.0
    %875 = vmatprep.subr.mxu0 0.0
    %876 = vmatpush2.msra.mxu0 0.0
    %877 = vmatprep.subr.mxu0 0.0
    %878 = vmatpush2.msra.mxu0 0.0
    %879 = vmatprep.subr.mxu0 0.0
    %880 = vmatpush2.msra.mxu0 0.0
    %881 = vmatprep.subr.mxu0 0.0
    %882 = vmatpush2.msra.mxu0 0.0
    %883 = vmatprep.subr.mxu0 0.0
    %884 = vmatpush2.msra.mxu0 0.0
    %885 = vmatprep.mubr.f32.mxu0 0.0
    %v886 = vand.u32 %v139, 4294901760
    %v887 = vsub.f32 %v139, %v886
    %v888 = vand.u32 %v887, 4294901760
    %889 = vmatmul.mubr.f32.gmra.mxu0 %v888
    %v890 = vpop.f32.mrf.mxu0
    %v891 = vadd.f32 %v705, %v890
    %v892 = vpop.f32.mrf.mxu0
    %893 = vmatprep.mubr.f32.mxu0 0.0
    %v894 = vand.u32 %v142, 4294901760
    %v895 = vsub.f32 %v142, %v894
    %v896 = vand.u32 %v895, 4294901760
    %897 = vmatmul.mubr.f32.gmra.mxu0 %v896
    %v898 = vpop.f32.mrf.mxu0
    %v899 = vadd.f32 %v712, %v898
    %v900 = vpop.f32.mrf.mxu0
    %901 = vmatprep.mubr.f32.mxu0 0.0
    %v902 = vand.u32 %v145, 4294901760
    %v903 = vsub.f32 %v145, %v902
    %v904 = vand.u32 %v903, 4294901760
    %905 = vmatmul.mubr.f32.gmra.mxu0 %v904
    %v906 = vpop.f32.mrf.mxu0
    %v907 = vadd.f32 %v719, %v906
    %v908 = vpop.f32.mrf.mxu0
    %909 = vmatprep.mubr.f32.mxu0 0.0
    %v910 = vand.u32 %v148, 4294901760
    %v911 = vsub.f32 %v148, %v910
    %v912 = vand.u32 %v911, 4294901760
    %913 = vmatmul.mubr.f32.gmra.mxu0 %v912
    %v914 = vpop.f32.mrf.mxu0
    %v915 = vadd.f32 %v726, %v914
    %v916 = vpop.f32.mrf.mxu0
    %917 = vmatprep.mubr.f32.mxu0 0.0
    %v918 = vand.u32 %v151, 4294901760
    %v919 = vsub.f32 %v151, %v918
    %v920 = vand.u32 %v919, 4294901760
    %921 = vmatmul.mubr.f32.gmra.mxu0 %v920
    %v922 = vpop.f32.mrf.mxu0
    %v923 = vadd.f32 %v733, %v922
    %v924 = vpop.f32.mrf.mxu0
    %925 = vmatprep.mubr.f32.mxu0 0.0
    %v926 = vand.u32 %v154, 4294901760
    %v927 = vsub.f32 %v154, %v926
    %v928 = vand.u32 %v927, 4294901760
    %929 = vmatmul.mubr.f32.gmra.mxu0 %v928
    %v930 = vpop.f32.mrf.mxu0
    %v931 = vadd.f32 %v740, %v930
    %v932 = vpop.f32.mrf.mxu0
    %933 = vmatprep.mubr.f32.mxu0 0.0
    %v934 = vand.u32 %v157, 4294901760
    %v935 = vsub.f32 %v157, %v934
    %v936 = vand.u32 %v935, 4294901760
    %937 = vmatmul.mubr.f32.gmra.mxu0 %v936
    %v938 = vpop.f32.mrf.mxu0
    %v939 = vadd.f32 %v747, %v938
    %v940 = vpop.f32.mrf.mxu0
    %941 = vmatprep.mubr.f32.mxu0 0.0
    %v942 = vand.u32 %v160, 4294901760
    %v943 = vsub.f32 %v160, %v942
    %v944 = vand.u32 %v943, 4294901760
    %945 = vmatmul.mubr.f32.gmra.mxu0 %v944
    %v946 = vpop.f32.mrf.mxu0
    %v947 = vadd.f32 %v754, %v946
    %v948 = vpop.f32.mrf.mxu0
    %949 = vmatprep.mubr.f32.mxu0 0.0
    %v950 = vand.u32 %v163, 4294901760
    %v951 = vsub.f32 %v163, %v950
    %v952 = vand.u32 %v951, 4294901760
    %953 = vmatmul.mubr.f32.gmra.mxu0 %v952
    %v954 = vpop.f32.mrf.mxu0
    %v955 = vadd.f32 %v761, %v954
    %v956 = vpop.f32.mrf.mxu0
    %957 = vmatprep.mubr.f32.mxu0 0.0
    %v958 = vand.u32 %v166, 4294901760
    %v959 = vsub.f32 %v166, %v958
    %v960 = vand.u32 %v959, 4294901760
    %961 = vmatmul.mubr.f32.gmra.mxu0 %v960
    %v962 = vpop.f32.mrf.mxu0
    %v963 = vadd.f32 %v768, %v962
    %v964 = vpop.f32.mrf.mxu0
    %965 = vmatprep.mubr.f32.mxu0 0.0
    %v966 = vand.u32 %v169, 4294901760
    %v967 = vsub.f32 %v169, %v966
    %v968 = vand.u32 %v967, 4294901760
    %969 = vmatmul.mubr.f32.gmra.mxu0 %v968
    %v970 = vpop.f32.mrf.mxu0
    %v971 = vadd.f32 %v775, %v970
    %v972 = vpop.f32.mrf.mxu0
    %973 = vmatprep.mubr.f32.mxu0 0.0
    %v974 = vand.u32 %v172, 4294901760
    %v975 = vsub.f32 %v172, %v974
    %v976 = vand.u32 %v975, 4294901760
    %977 = vmatmul.mubr.f32.gmra.mxu0 %v976
    %v978 = vpop.f32.mrf.mxu0
    %v979 = vadd.f32 %v782, %v978
    %v980 = vpop.f32.mrf.mxu0
    %981 = vmatprep.mubr.f32.mxu0 0.0
    %v982 = vand.u32 %v175, 4294901760
    %v983 = vsub.f32 %v175, %v982
    %v984 = vand.u32 %v983, 4294901760
    %985 = vmatmul.mubr.f32.gmra.mxu0 %v984
    %v986 = vpop.f32.mrf.mxu0
    %v987 = vadd.f32 %v789, %v986
    %v988 = vpop.f32.mrf.mxu0
    %989 = vmatprep.mubr.f32.mxu0 0.0
    %v990 = vand.u32 %v178, 4294901760
    %v991 = vsub.f32 %v178, %v990
    %v992 = vand.u32 %v991, 4294901760
    %993 = vmatmul.mubr.f32.gmra.mxu0 %v992
    %v994 = vpop.f32.mrf.mxu0
    %v995 = vadd.f32 %v796, %v994
    %v996 = vpop.f32.mrf.mxu0
    %997 = vmatprep.mubr.f32.mxu0 0.0
    %v998 = vand.u32 %v181, 4294901760
    %v999 = vsub.f32 %v181, %v998
    %v1000 = vand.u32 %v999, 4294901760
    %1001 = vmatmul.mubr.f32.gmra.mxu0 %v1000
    %v1002 = vpop.f32.mrf.mxu0
    %v1003 = vadd.f32 %v803, %v1002
    %v1004 = vpop.f32.mrf.mxu0
    %1005 = vmatprep.mubr.f32.mxu0 0.0
    %v1006 = vand.u32 %v184, 4294901760
    %v1007 = vsub.f32 %v184, %v1006
    %v1008 = vand.u32 %v1007, 4294901760
    %1009 = vmatmul.mubr.f32.gmra.mxu0 %v1008
    %v1010 = vpop.f32.mrf.mxu0
    %v1011 = vadd.f32 %v810, %v1010
    %v1012 = vpop.f32.mrf.mxu0
    %1013 = vdwg.mxu0
    %1014 = vmatprep.subr.mxu0 0.0
    %1015 = vmatpush1.msra.mxu0 0.0
    %1016 = vmatprep.subr.mxu0 0.0
    %1017 = vmatpush1.msra.mxu0 0.0
    %1018 = vmatprep.subr.mxu0 0.0
    %1019 = vmatpush1.msra.mxu0 0.0
    %1020 = vmatprep.subr.mxu0 0.0
    %1021 = vmatpush1.msra.mxu0 0.0
    %1022 = vmatprep.subr.mxu0 0.0
    %1023 = vmatpush1.msra.mxu0 0.0
    %1024 = vmatprep.subr.mxu0 0.0
    %1025 = vmatpush1.msra.mxu0 0.0
    %1026 = vmatprep.subr.mxu0 0.0
    %1027 = vmatpush1.msra.mxu0 0.0
    %1028 = vmatprep.subr.mxu0 0.0
    %1029 = vmatpush1.msra.mxu0 0.0
    %1030 = vmatprep.subr.mxu0 0.0
    %v1031 = vand.u32 %v136, 4294901760
    %v1032 = vsub.f32 %v136, %v1031
    %v1033 = vand.u32 %v1032, 4294901760
    %1034 = vmatpush1.msra.mxu0 %v1033
    %1035 = vmatprep.subr.mxu0 0.0
    %v1036 = vand.u32 %v135, 4294901760
    %v1037 = vsub.f32 %v135, %v1036
    %v1038 = vand.u32 %v1037, 4294901760
    %1039 = vmatpush1.msra.mxu0 %v1038
    %1040 = vmatprep.subr.mxu0 0.0
    %v1041 = vand.u32 %v134, 4294901760
    %v1042 = vsub.f32 %v134, %v1041
    %v1043 = vand.u32 %v1042, 4294901760
    %1044 = vmatpush1.msra.mxu0 %v1043
    %1045 = vmatprep.subr.mxu0 0.0
    %v1046 = vand.u32 %v133, 4294901760
    %v1047 = vsub.f32 %v133, %v1046
    %v1048 = vand.u32 %v1047, 4294901760
    %1049 = vmatpush1.msra.mxu0 %v1048
    %1050 = vmatprep.subr.mxu0 0.0
    %v1051 = vand.u32 %v132, 4294901760
    %v1052 = vsub.f32 %v132, %v1051
    %v1053 = vand.u32 %v1052, 4294901760
    %1054 = vmatpush1.msra.mxu0 %v1053
    %1055 = vmatprep.subr.mxu0 0.0
    %v1056 = vand.u32 %v131, 4294901760
    %v1057 = vsub.f32 %v131, %v1056
    %v1058 = vand.u32 %v1057, 4294901760
    %1059 = vmatpush1.msra.mxu0 %v1058
    %1060 = vmatprep.subr.mxu0 0.0
    %v1061 = vand.u32 %v130, 4294901760
    %v1062 = vsub.f32 %v130, %v1061
    %v1063 = vand.u32 %v1062, 4294901760
    %1064 = vmatpush1.msra.mxu0 %v1063
    %1065 = vmatprep.subr.mxu0 0.0
    %v1066 = vand.u32 %v129, 4294901760
    %v1067 = vsub.f32 %v129, %v1066
    %v1068 = vand.u32 %v1067, 4294901760
    %1069 = vmatpush1.msra.mxu0 %v1068
    %1070 = vmatprep.subr.mxu0 0.0
    %1071 = vmatpush2.msra.mxu0 0.0
    %1072 = vmatprep.subr.mxu0 0.0
    %1073 = vmatpush2.msra.mxu0 0.0
    %1074 = vmatprep.subr.mxu0 0.0
    %1075 = vmatpush2.msra.mxu0 0.0
    %1076 = vmatprep.subr.mxu0 0.0
    %1077 = vmatpush2.msra.mxu0 0.0
    %1078 = vmatprep.subr.mxu0 0.0
    %1079 = vmatpush2.msra.mxu0 0.0
    %1080 = vmatprep.subr.mxu0 0.0
    %1081 = vmatpush2.msra.mxu0 0.0
    %1082 = vmatprep.subr.mxu0 0.0
    %1083 = vmatpush2.msra.mxu0 0.0
    %1084 = vmatprep.subr.mxu0 0.0
    %1085 = vmatpush2.msra.mxu0 0.0
    %1086 = vmatprep.subr.mxu0 0.0
    %1087 = vmatpush2.msra.mxu0 0.0
    %1088 = vmatprep.subr.mxu0 0.0
    %1089 = vmatpush2.msra.mxu0 0.0
    %1090 = vmatprep.subr.mxu0 0.0
    %1091 = vmatpush2.msra.mxu0 0.0
    %1092 = vmatprep.subr.mxu0 0.0
    %1093 = vmatpush2.msra.mxu0 0.0
    %1094 = vmatprep.subr.mxu0 0.0
    %1095 = vmatpush2.msra.mxu0 0.0
    %1096 = vmatprep.subr.mxu0 0.0
    %1097 = vmatpush2.msra.mxu0 0.0
    %1098 = vmatprep.subr.mxu0 0.0
    %1099 = vmatpush2.msra.mxu0 0.0
    %1100 = vmatprep.subr.mxu0 0.0
    %1101 = vmatpush2.msra.mxu0 0.0
    %1102 = vmatprep.mubr.f32.mxu0 0.0
    %v1103 = vand.u32 %v139, 4294901760
    %1104 = vmatmul.mubr.f32.gmra.mxu0 %v1103
    %v1105 = vpop.f32.mrf.mxu0
    %v1106 = vadd.f32 %v891, %v1105
    %v1107 = vpop.f32.mrf.mxu0
    %1108 = vmatprep.mubr.f32.mxu0 0.0
    %v1109 = vand.u32 %v142, 4294901760
    %1110 = vmatmul.mubr.f32.gmra.mxu0 %v1109
    %v1111 = vpop.f32.mrf.mxu0
    %v1112 = vadd.f32 %v899, %v1111
    %v1113 = vpop.f32.mrf.mxu0
    %1114 = vmatprep.mubr.f32.mxu0 0.0
    %v1115 = vand.u32 %v145, 4294901760
    %1116 = vmatmul.mubr.f32.gmra.mxu0 %v1115
    %v1117 = vpop.f32.mrf.mxu0
    %v1118 = vadd.f32 %v907, %v1117
    %v1119 = vpop.f32.mrf.mxu0
    %1120 = vmatprep.mubr.f32.mxu0 0.0
    %v1121 = vand.u32 %v148, 4294901760
    %1122 = vmatmul.mubr.f32.gmra.mxu0 %v1121
    %v1123 = vpop.f32.mrf.mxu0
    %v1124 = vadd.f32 %v915, %v1123
    %v1125 = vpop.f32.mrf.mxu0
    %1126 = vmatprep.mubr.f32.mxu0 0.0
    %v1127 = vand.u32 %v151, 4294901760
    %1128 = vmatmul.mubr.f32.gmra.mxu0 %v1127
    %v1129 = vpop.f32.mrf.mxu0
    %v1130 = vadd.f32 %v923, %v1129
    %v1131 = vpop.f32.mrf.mxu0
    %1132 = vmatprep.mubr.f32.mxu0 0.0
    %v1133 = vand.u32 %v154, 4294901760
    %1134 = vmatmul.mubr.f32.gmra.mxu0 %v1133
    %v1135 = vpop.f32.mrf.mxu0
    %v1136 = vadd.f32 %v931, %v1135
    %v1137 = vpop.f32.mrf.mxu0
    %1138 = vmatprep.mubr.f32.mxu0 0.0
    %v1139 = vand.u32 %v157, 4294901760
    %1140 = vmatmul.mubr.f32.gmra.mxu0 %v1139
    %v1141 = vpop.f32.mrf.mxu0
    %v1142 = vadd.f32 %v939, %v1141
    %v1143 = vpop.f32.mrf.mxu0
    %1144 = vmatprep.mubr.f32.mxu0 0.0
    %v1145 = vand.u32 %v160, 4294901760
    %1146 = vmatmul.mubr.f32.gmra.mxu0 %v1145
    %v1147 = vpop.f32.mrf.mxu0
    %v1148 = vadd.f32 %v947, %v1147
    %v1149 = vpop.f32.mrf.mxu0
    %1150 = vmatprep.mubr.f32.mxu0 0.0
    %v1151 = vand.u32 %v163, 4294901760
    %1152 = vmatmul.mubr.f32.gmra.mxu0 %v1151
    %v1153 = vpop.f32.mrf.mxu0
    %v1154 = vadd.f32 %v955, %v1153
    %v1155 = vpop.f32.mrf.mxu0
    %1156 = vmatprep.mubr.f32.mxu0 0.0
    %v1157 = vand.u32 %v166, 4294901760
    %1158 = vmatmul.mubr.f32.gmra.mxu0 %v1157
    %v1159 = vpop.f32.mrf.mxu0
    %v1160 = vadd.f32 %v963, %v1159
    %v1161 = vpop.f32.mrf.mxu0
    %1162 = vmatprep.mubr.f32.mxu0 0.0
    %v1163 = vand.u32 %v169, 4294901760
    %1164 = vmatmul.mubr.f32.gmra.mxu0 %v1163
    %v1165 = vpop.f32.mrf.mxu0
    %v1166 = vadd.f32 %v971, %v1165
    %v1167 = vpop.f32.mrf.mxu0
    %1168 = vmatprep.mubr.f32.mxu0 0.0
    %v1169 = vand.u32 %v172, 4294901760
    %1170 = vmatmul.mubr.f32.gmra.mxu0 %v1169
    %v1171 = vpop.f32.mrf.mxu0
    %v1172 = vadd.f32 %v979, %v1171
    %v1173 = vpop.f32.mrf.mxu0
    %1174 = vmatprep.mubr.f32.mxu0 0.0
    %v1175 = vand.u32 %v175, 4294901760
    %1176 = vmatmul.mubr.f32.gmra.mxu0 %v1175
    %v1177 = vpop.f32.mrf.mxu0
    %v1178 = vadd.f32 %v987, %v1177
    %v1179 = vpop.f32.mrf.mxu0
    %1180 = vmatprep.mubr.f32.mxu0 0.0
    %v1181 = vand.u32 %v178, 4294901760
    %1182 = vmatmul.mubr.f32.gmra.mxu0 %v1181
    %v1183 = vpop.f32.mrf.mxu0
    %v1184 = vadd.f32 %v995, %v1183
    %v1185 = vpop.f32.mrf.mxu0
    %1186 = vmatprep.mubr.f32.mxu0 0.0
    %v1187 = vand.u32 %v181, 4294901760
    %1188 = vmatmul.mubr.f32.gmra.mxu0 %v1187
    %v1189 = vpop.f32.mrf.mxu0
    %v1190 = vadd.f32 %v1003, %v1189
    %v1191 = vpop.f32.mrf.mxu0
    %1192 = vmatprep.mubr.f32.mxu0 0.0
    %v1193 = vand.u32 %v184, 4294901760
    %1194 = vmatmul.mubr.f32.gmra.mxu0 %v1193
    %v1195 = vpop.f32.mrf.mxu0
    %v1196 = vadd.f32 %v1011, %v1195
    %v1197 = vpop.f32.mrf.mxu0
    %1198 = vdwg.mxu0
    %1199 = vmatprep.subr.mxu0 0.0
    %1200 = vmatpush1.msra.mxu0 0.0
    %1201 = vmatprep.subr.mxu0 0.0
    %1202 = vmatpush1.msra.mxu0 0.0
    %1203 = vmatprep.subr.mxu0 0.0
    %1204 = vmatpush1.msra.mxu0 0.0
    %1205 = vmatprep.subr.mxu0 0.0
    %1206 = vmatpush1.msra.mxu0 0.0
    %1207 = vmatprep.subr.mxu0 0.0
    %1208 = vmatpush1.msra.mxu0 0.0
    %1209 = vmatprep.subr.mxu0 0.0
    %1210 = vmatpush1.msra.mxu0 0.0
    %1211 = vmatprep.subr.mxu0 0.0
    %1212 = vmatpush1.msra.mxu0 0.0
    %1213 = vmatprep.subr.mxu0 0.0
    %1214 = vmatpush1.msra.mxu0 0.0
    %1215 = vmatprep.subr.mxu0 0.0
    %v1216 = vand.u32 %v136, 4294901760
    %1217 = vmatpush1.msra.mxu0 %v1216
    %1218 = vmatprep.subr.mxu0 0.0
    %v1219 = vand.u32 %v135, 4294901760
    %1220 = vmatpush1.msra.mxu0 %v1219
    %1221 = vmatprep.subr.mxu0 0.0
    %v1222 = vand.u32 %v134, 4294901760
    %1223 = vmatpush1.msra.mxu0 %v1222
    %1224 = vmatprep.subr.mxu0 0.0
    %v1225 = vand.u32 %v133, 4294901760
    %1226 = vmatpush1.msra.mxu0 %v1225
    %1227 = vmatprep.subr.mxu0 0.0
    %v1228 = vand.u32 %v132, 4294901760
    %1229 = vmatpush1.msra.mxu0 %v1228
    %1230 = vmatprep.subr.mxu0 0.0
    %v1231 = vand.u32 %v131, 4294901760
    %1232 = vmatpush1.msra.mxu0 %v1231
    %1233 = vmatprep.subr.mxu0 0.0
    %v1234 = vand.u32 %v130, 4294901760
    %1235 = vmatpush1.msra.mxu0 %v1234
    %1236 = vmatprep.subr.mxu0 0.0
    %v1237 = vand.u32 %v129, 4294901760
    %1238 = vmatpush1.msra.mxu0 %v1237
    %1239 = vmatprep.subr.mxu0 0.0
    %1240 = vmatpush2.msra.mxu0 0.0
    %1241 = vmatprep.subr.mxu0 0.0
    %1242 = vmatpush2.msra.mxu0 0.0
    %1243 = vmatprep.subr.mxu0 0.0
    %1244 = vmatpush2.msra.mxu0 0.0
    %1245 = vmatprep.subr.mxu0 0.0
    %1246 = vmatpush2.msra.mxu0 0.0
    %1247 = vmatprep.subr.mxu0 0.0
    %1248 = vmatpush2.msra.mxu0 0.0
    %1249 = vmatprep.subr.mxu0 0.0
    %1250 = vmatpush2.msra.mxu0 0.0
    %1251 = vmatprep.subr.mxu0 0.0
    %1252 = vmatpush2.msra.mxu0 0.0
    %1253 = vmatprep.subr.mxu0 0.0
    %1254 = vmatpush2.msra.mxu0 0.0
    %1255 = vmatprep.subr.mxu0 0.0
    %1256 = vmatpush2.msra.mxu0 0.0
    %1257 = vmatprep.subr.mxu0 0.0
    %1258 = vmatpush2.msra.mxu0 0.0
    %1259 = vmatprep.subr.mxu0 0.0
    %1260 = vmatpush2.msra.mxu0 0.0
    %1261 = vmatprep.subr.mxu0 0.0
    %1262 = vmatpush2.msra.mxu0 0.0
    %1263 = vmatprep.subr.mxu0 0.0
    %1264 = vmatpush2.msra.mxu0 0.0
    %1265 = vmatprep.subr.mxu0 0.0
    %1266 = vmatpush2.msra.mxu0 0.0
    %1267 = vmatprep.subr.mxu0 0.0
    %1268 = vmatpush2.msra.mxu0 0.0
    %1269 = vmatprep.subr.mxu0 0.0
    %1270 = vmatpush2.msra.mxu0 0.0
    %1271 = vmatprep.mubr.f32.mxu0 0.0
    %v1272 = vand.u32 %v139, 4294901760
    %1273 = vmatmul.mubr.f32.gmra.mxu0 %v1272
    %v1274 = vpop.f32.mrf.mxu0
    %v1275 = vadd.f32 %v1106, %v1274
    %v1276 = vpop.f32.mrf.mxu0
    %1277 = vmatprep.mubr.f32.mxu0 0.0
    %v1278 = vand.u32 %v142, 4294901760
    %1279 = vmatmul.mubr.f32.gmra.mxu0 %v1278
    %v1280 = vpop.f32.mrf.mxu0
    %v1281 = vadd.f32 %v1112, %v1280
    %v1282 = vpop.f32.mrf.mxu0
    %1283 = vmatprep.mubr.f32.mxu0 0.0
    %v1284 = vand.u32 %v145, 4294901760
    %1285 = vmatmul.mubr.f32.gmra.mxu0 %v1284
    %v1286 = vpop.f32.mrf.mxu0
    %v1287 = vadd.f32 %v1118, %v1286
    %v1288 = vpop.f32.mrf.mxu0
    %1289 = vmatprep.mubr.f32.mxu0 0.0
    %v1290 = vand.u32 %v148, 4294901760
    %1291 = vmatmul.mubr.f32.gmra.mxu0 %v1290
    %v1292 = vpop.f32.mrf.mxu0
    %v1293 = vadd.f32 %v1124, %v1292
    %v1294 = vpop.f32.mrf.mxu0
    %1295 = vmatprep.mubr.f32.mxu0 0.0
    %v1296 = vand.u32 %v151, 4294901760
    %1297 = vmatmul.mubr.f32.gmra.mxu0 %v1296
    %v1298 = vpop.f32.mrf.mxu0
    %v1299 = vadd.f32 %v1130, %v1298
    %v1300 = vpop.f32.mrf.mxu0
    %1301 = vmatprep.mubr.f32.mxu0 0.0
    %v1302 = vand.u32 %v154, 4294901760
    %1303 = vmatmul.mubr.f32.gmra.mxu0 %v1302
    %v1304 = vpop.f32.mrf.mxu0
    %v1305 = vadd.f32 %v1136, %v1304
    %v1306 = vpop.f32.mrf.mxu0
    %1307 = vmatprep.mubr.f32.mxu0 0.0
    %v1308 = vand.u32 %v157, 4294901760
    %1309 = vmatmul.mubr.f32.gmra.mxu0 %v1308
    %v1310 = vpop.f32.mrf.mxu0
    %v1311 = vadd.f32 %v1142, %v1310
    %v1312 = vpop.f32.mrf.mxu0
    %1313 = vmatprep.mubr.f32.mxu0 0.0
    %v1314 = vand.u32 %v160, 4294901760
    %1315 = vmatmul.mubr.f32.gmra.mxu0 %v1314
    %v1316 = vpop.f32.mrf.mxu0
    %v1317 = vadd.f32 %v1148, %v1316
    %v1318 = vpop.f32.mrf.mxu0
    %1319 = vmatprep.mubr.f32.mxu0 0.0
    %v1320 = vand.u32 %v163, 4294901760
    %1321 = vmatmul.mubr.f32.gmra.mxu0 %v1320
    %v1322 = vpop.f32.mrf.mxu0
    %v1323 = vadd.f32 %v1154, %v1322
    %v1324 = vpop.f32.mrf.mxu0
    %1325 = vmatprep.mubr.f32.mxu0 0.0
    %v1326 = vand.u32 %v166, 4294901760
    %1327 = vmatmul.mubr.f32.gmra.mxu0 %v1326
    %v1328 = vpop.f32.mrf.mxu0
    %v1329 = vadd.f32 %v1160, %v1328
    %v1330 = vpop.f32.mrf.mxu0
    %1331 = vmatprep.mubr.f32.mxu0 0.0
    %v1332 = vand.u32 %v169, 4294901760
    %1333 = vmatmul.mubr.f32.gmra.mxu0 %v1332
    %v1334 = vpop.f32.mrf.mxu0
    %v1335 = vadd.f32 %v1166, %v1334
    %v1336 = vpop.f32.mrf.mxu0
    %1337 = vmatprep.mubr.f32.mxu0 0.0
    %v1338 = vand.u32 %v172, 4294901760
    %1339 = vmatmul.mubr.f32.gmra.mxu0 %v1338
    %v1340 = vpop.f32.mrf.mxu0
    %v1341 = vadd.f32 %v1172, %v1340
    %v1342 = vpop.f32.mrf.mxu0
    %1343 = vmatprep.mubr.f32.mxu0 0.0
    %v1344 = vand.u32 %v175, 4294901760
    %1345 = vmatmul.mubr.f32.gmra.mxu0 %v1344
    %v1346 = vpop.f32.mrf.mxu0
    %v1347 = vadd.f32 %v1178, %v1346
    %v1348 = vpop.f32.mrf.mxu0
    %1349 = vmatprep.mubr.f32.mxu0 0.0
    %v1350 = vand.u32 %v178, 4294901760
    %1351 = vmatmul.mubr.f32.gmra.mxu0 %v1350
    %v1352 = vpop.f32.mrf.mxu0
    %v1353 = vadd.f32 %v1184, %v1352
    %v1354 = vpop.f32.mrf.mxu0
    %1355 = vmatprep.mubr.f32.mxu0 0.0
    %v1356 = vand.u32 %v181, 4294901760
    %1357 = vmatmul.mubr.f32.gmra.mxu0 %v1356
    %v1358 = vpop.f32.mrf.mxu0
    %v1359 = vadd.f32 %v1190, %v1358
    %v1360 = vpop.f32.mrf.mxu0
    %1361 = vmatprep.mubr.f32.mxu0 0.0
    %v1362 = vand.u32 %v184, 4294901760
    %1363 = vmatmul.mubr.f32.gmra.mxu0 %v1362
    %v1364 = vpop.f32.mrf.mxu0
    %v1365 = vadd.f32 %v1196, %v1364
    %v1366 = vpop.f32.mrf.mxu0
    %1367 = vdwg.mxu0
    %v1368 = vld [vmem:[%s1] sm:$0xff]
    %v1369 = vld [vmem:[%s1 + $0x8] sm:$0xff]
    %v1370 = vld [vmem:[%s1 + $0x10] sm:$0xff]
    %v1371 = vld [vmem:[%s1 + $0x18] sm:$0xff]
    %v1372 = vld [vmem:[%s1 + $0x20] sm:$0xff]
    %v1373 = vld [vmem:[%s1 + $0x28] sm:$0xff]
    %v1374 = vld [vmem:[%s1 + $0x30] sm:$0xff]
    %v1375 = vld [vmem:[%s1 + $0x38] sm:$0xff]
    %v1376 = vld [vmem:[%s1 + $0x40] sm:$0xff]
    %v1377 = vld [vmem:[%s1 + $0x48] sm:$0xff]
    %v1378 = vld [vmem:[%s1 + $0x50] sm:$0xff]
    %v1379 = vld [vmem:[%s1 + $0x58] sm:$0xff]
    %v1380 = vld [vmem:[%s1 + $0x60] sm:$0xff]
    %v1381 = vld [vmem:[%s1 + $0x68] sm:$0xff]
    %v1382 = vld [vmem:[%s1 + $0x70] sm:$0xff]
    %v1383 = vld [vmem:[%s1 + $0x78] sm:$0xff]
    %v1384 = vmul.f32 %v1368, %v1275
    %v1385 = vmul.f32 %v1369, %v1281
    %v1386 = vmul.f32 %v1370, %v1287
    %v1387 = vmul.f32 %v1371, %v1293
    %v1388 = vmul.f32 %v1372, %v1299
    %v1389 = vmul.f32 %v1373, %v1305
    %v1390 = vmul.f32 %v1374, %v1311
    %v1391 = vmul.f32 %v1375, %v1317
    %v1392 = vmul.f32 %v1376, %v1323
    %v1393 = vmul.f32 %v1377, %v1329
    %v1394 = vmul.f32 %v1378, %v1335
    %v1395 = vmul.f32 %v1379, %v1341
    %v1396 = vmul.f32 %v1380, %v1347
    %v1397 = vmul.f32 %v1381, %v1353
    %v1398 = vmul.f32 %v1382, %v1359
    %v1399 = vmul.f32 %v1383, %v1365
    %vm1400 = vcmask 261120
    %v1402 = vsel %vm1400, 1.0, 0
    %v1405 = vsel %vm1400, %v1384, 0
    %v1408 = vsel %vm1400, %v1385, 0
    %v1411 = vsel %vm1400, %v1386, 0
    %v1414 = vsel %vm1400, %v1387, 0
    %v1417 = vsel %vm1400, %v1388, 0
    %v1420 = vsel %vm1400, %v1389, 0
    %v1423 = vsel %vm1400, %v1390, 0
    %v1426 = vsel %vm1400, %v1391, 0
    %v1429 = vsel %vm1400, %v1392, 0
    %v1432 = vsel %vm1400, %v1393, 0
    %v1435 = vsel %vm1400, %v1394, 0
    %v1438 = vsel %vm1400, %v1395, 0
    %v1441 = vsel %vm1400, %v1396, 0
    %v1444 = vsel %vm1400, %v1397, 0
    %v1447 = vsel %vm1400, %v1398, 0
    %v1450 = vsel %vm1400, %v1399, 0
    %1452 = vmatprep.subr.mxu0 0.0
    %v1453 = vand.u32 %v1450, 4294901760
    %1454 = vmatpush1.xpose.msra.mxu0 %v1453
    %1455 = vmatprep.subr.mxu0 0.0
    %v1456 = vand.u32 %v1447, 4294901760
    %1457 = vmatpush1.xpose.msra.mxu0 %v1456
    %1458 = vmatprep.subr.mxu0 0.0
    %v1459 = vand.u32 %v1444, 4294901760
    %1460 = vmatpush1.xpose.msra.mxu0 %v1459
    %1461 = vmatprep.subr.mxu0 0.0
    %v1462 = vand.u32 %v1441, 4294901760
    %1463 = vmatpush1.xpose.msra.mxu0 %v1462
    %1464 = vmatprep.subr.mxu0 0.0
    %v1465 = vand.u32 %v1438, 4294901760
    %1466 = vmatpush1.xpose.msra.mxu0 %v1465
    %1467 = vmatprep.subr.mxu0 0.0
    %v1468 = vand.u32 %v1435, 4294901760
    %1469 = vmatpush1.xpose.msra.mxu0 %v1468
    %1470 = vmatprep.subr.mxu0 0.0
    %v1471 = vand.u32 %v1432, 4294901760
    %1472 = vmatpush1.xpose.msra.mxu0 %v1471
    %1473 = vmatprep.subr.mxu0 0.0
    %v1474 = vand.u32 %v1429, 4294901760
    %1475 = vmatpush1.xpose.msra.mxu0 %v1474
    %1476 = vmatprep.subr.mxu0 0.0
    %v1477 = vand.u32 %v1426, 4294901760
    %1478 = vmatpush1.xpose.msra.mxu0 %v1477
    %1479 = vmatprep.subr.mxu0 0.0
    %v1480 = vand.u32 %v1423, 4294901760
    %1481 = vmatpush1.xpose.msra.mxu0 %v1480
    %1482 = vmatprep.subr.mxu0 0.0
    %v1483 = vand.u32 %v1420, 4294901760
    %1484 = vmatpush1.xpose.msra.mxu0 %v1483
    %1485 = vmatprep.subr.mxu0 0.0
    %v1486 = vand.u32 %v1417, 4294901760
    %1487 = vmatpush1.xpose.msra.mxu0 %v1486
    %1488 = vmatprep.subr.mxu0 0.0
    %v1489 = vand.u32 %v1414, 4294901760
    %1490 = vmatpush1.xpose.msra.mxu0 %v1489
    %1491 = vmatprep.subr.mxu0 0.0
    %v1492 = vand.u32 %v1411, 4294901760
    %1493 = vmatpush1.xpose.msra.mxu0 %v1492
    %1494 = vmatprep.subr.mxu0 0.0
    %v1495 = vand.u32 %v1408, 4294901760
    %1496 = vmatpush1.xpose.msra.mxu0 %v1495
    %1497 = vmatprep.subr.mxu0 0.0
    %v1498 = vand.u32 %v1405, 4294901760
    %1499 = vmatpush1.xpose.msra.mxu0 %v1498
    %1500 = vmatprep.subr.mxu0 0.0
    %1501 = vmatpush2.xpose.msra.mxu0 0.0
    %1502 = vmatprep.subr.mxu0 0.0
    %1503 = vmatpush2.xpose.msra.mxu0 0.0
    %1504 = vmatprep.subr.mxu0 0.0
    %1505 = vmatpush2.xpose.msra.mxu0 0.0
    %1506 = vmatprep.subr.mxu0 0.0
    %1507 = vmatpush2.xpose.msra.mxu0 0.0
    %1508 = vmatprep.subr.mxu0 0.0
    %1509 = vmatpush2.xpose.msra.mxu0 0.0
    %1510 = vmatprep.subr.mxu0 0.0
    %1511 = vmatpush2.xpose.msra.mxu0 0.0
    %1512 = vmatprep.subr.mxu0 0.0
    %1513 = vmatpush2.xpose.msra.mxu0 0.0
    %1514 = vmatprep.subr.mxu0 0.0
    %1515 = vmatpush2.xpose.msra.mxu0 0.0
    %1516 = vmatprep.subr.mxu0 0.0
    %1517 = vmatpush2.xpose.msra.mxu0 0.0
    %1518 = vmatprep.subr.mxu0 0.0
    %1519 = vmatpush2.xpose.msra.mxu0 0.0
    %1520 = vmatprep.subr.mxu0 0.0
    %1521 = vmatpush2.xpose.msra.mxu0 0.0
    %1522 = vmatprep.subr.mxu0 0.0
    %1523 = vmatpush2.xpose.msra.mxu0 0.0
    %1524 = vmatprep.subr.mxu0 0.0
    %1525 = vmatpush2.xpose.msra.mxu0 0.0
    %1526 = vmatprep.subr.mxu0 0.0
    %1527 = vmatpush2.xpose.msra.mxu0 0.0
    %1528 = vmatprep.subr.mxu0 0.0
    %1529 = vmatpush2.xpose.msra.mxu0 0.0
    %1530 = vmatprep.subr.mxu0 0.0
    %1531 = vmatpush2.xpose.msra.mxu0 0.0
    %1532 = vmatprep.mubr.f32.mxu0 0.0
    %v1533 = vand.u32 %v1402, 4294901760
    %v1534 = vsub.f32 %v1402, %v1533
    %v1535 = vand.u32 %v1534, 4294901760
    %v1536 = vsub.f32 %v1534, %v1535
    %v1537 = vand.u32 %v1536, 4294901760
    %1538 = vmatmul.mubr.f32.gmra.mxu0 %v1537
    %v1539 = vpop.f32.mrf.mxu0
    %v1540 = vadd.f32 0.0, %v1539
    %v1541 = vpop.f32.mrf.mxu0
    %1542 = vdwg.mxu0
    %1543 = vmatprep.subr.mxu0 0.0
    %v1544 = vand.u32 %v1450, 4294901760
    %v1545 = vsub.f32 %v1450, %v1544
    %v1546 = vand.u32 %v1545, 4294901760
    %v1547 = vsub.f32 %v1545, %v1546
    %v1548 = vand.u32 %v1547, 4294901760
    %1549 = vmatpush1.xpose.msra.mxu0 %v1548
    %1550 = vmatprep.subr.mxu0 0.0
    %v1551 = vand.u32 %v1447, 4294901760
    %v1552 = vsub.f32 %v1447, %v1551
    %v1553 = vand.u32 %v1552, 4294901760
    %v1554 = vsub.f32 %v1552, %v1553
    %v1555 = vand.u32 %v1554, 4294901760
    %1556 = vmatpush1.xpose.msra.mxu0 %v1555
    %1557 = vmatprep.subr.mxu0 0.0
    %v1558 = vand.u32 %v1444, 4294901760
    %v1559 = vsub.f32 %v1444, %v1558
    %v1560 = vand.u32 %v1559, 4294901760
    %v1561 = vsub.f32 %v1559, %v1560
    %v1562 = vand.u32 %v1561, 4294901760
    %1563 = vmatpush1.xpose.msra.mxu0 %v1562
    %1564 = vmatprep.subr.mxu0 0.0
    %v1565 = vand.u32 %v1441, 4294901760
    %v1566 = vsub.f32 %v1441, %v1565
    %v1567 = vand.u32 %v1566, 4294901760
    %v1568 = vsub.f32 %v1566, %v1567
    %v1569 = vand.u32 %v1568, 4294901760
    %1570 = vmatpush1.xpose.msra.mxu0 %v1569
    %1571 = vmatprep.subr.mxu0 0.0
    %v1572 = vand.u32 %v1438, 4294901760
    %v1573 = vsub.f32 %v1438, %v1572
    %v1574 = vand.u32 %v1573, 4294901760
    %v1575 = vsub.f32 %v1573, %v1574
    %v1576 = vand.u32 %v1575, 4294901760
    %1577 = vmatpush1.xpose.msra.mxu0 %v1576
    %1578 = vmatprep.subr.mxu0 0.0
    %v1579 = vand.u32 %v1435, 4294901760
    %v1580 = vsub.f32 %v1435, %v1579
    %v1581 = vand.u32 %v1580, 4294901760
    %v1582 = vsub.f32 %v1580, %v1581
    %v1583 = vand.u32 %v1582, 4294901760
    %1584 = vmatpush1.xpose.msra.mxu0 %v1583
    %1585 = vmatprep.subr.mxu0 0.0
    %v1586 = vand.u32 %v1432, 4294901760
    %v1587 = vsub.f32 %v1432, %v1586
    %v1588 = vand.u32 %v1587, 4294901760
    %v1589 = vsub.f32 %v1587, %v1588
    %v1590 = vand.u32 %v1589, 4294901760
    %1591 = vmatpush1.xpose.msra.mxu0 %v1590
    %1592 = vmatprep.subr.mxu0 0.0
    %v1593 = vand.u32 %v1429, 4294901760
    %v1594 = vsub.f32 %v1429, %v1593
    %v1595 = vand.u32 %v1594, 4294901760
    %v1596 = vsub.f32 %v1594, %v1595
    %v1597 = vand.u32 %v1596, 4294901760
    %1598 = vmatpush1.xpose.msra.mxu0 %v1597
    %1599 = vmatprep.subr.mxu0 0.0
    %v1600 = vand.u32 %v1426, 4294901760
    %v1601 = vsub.f32 %v1426, %v1600
    %v1602 = vand.u32 %v1601, 4294901760
    %v1603 = vsub.f32 %v1601, %v1602
    %v1604 = vand.u32 %v1603, 4294901760
    %1605 = vmatpush1.xpose.msra.mxu0 %v1604
    %1606 = vmatprep.subr.mxu0 0.0
    %v1607 = vand.u32 %v1423, 4294901760
    %v1608 = vsub.f32 %v1423, %v1607
    %v1609 = vand.u32 %v1608, 4294901760
    %v1610 = vsub.f32 %v1608, %v1609
    %v1611 = vand.u32 %v1610, 4294901760
    %1612 = vmatpush1.xpose.msra.mxu0 %v1611
    %1613 = vmatprep.subr.mxu0 0.0
    %v1614 = vand.u32 %v1420, 4294901760
    %v1615 = vsub.f32 %v1420, %v1614
    %v1616 = vand.u32 %v1615, 4294901760
    %v1617 = vsub.f32 %v1615, %v1616
    %v1618 = vand.u32 %v1617, 4294901760
    %1619 = vmatpush1.xpose.msra.mxu0 %v1618
    %1620 = vmatprep.subr.mxu0 0.0
    %v1621 = vand.u32 %v1417, 4294901760
    %v1622 = vsub.f32 %v1417, %v1621
    %v1623 = vand.u32 %v1622, 4294901760
    %v1624 = vsub.f32 %v1622, %v1623
    %v1625 = vand.u32 %v1624, 4294901760
    %1626 = vmatpush1.xpose.msra.mxu0 %v1625
    %1627 = vmatprep.subr.mxu0 0.0
    %v1628 = vand.u32 %v1414, 4294901760
    %v1629 = vsub.f32 %v1414, %v1628
    %v1630 = vand.u32 %v1629, 4294901760
    %v1631 = vsub.f32 %v1629, %v1630
    %v1632 = vand.u32 %v1631, 4294901760
    %1633 = vmatpush1.xpose.msra.mxu0 %v1632
    %1634 = vmatprep.subr.mxu0 0.0
    %v1635 = vand.u32 %v1411, 4294901760
    %v1636 = vsub.f32 %v1411, %v1635
    %v1637 = vand.u32 %v1636, 4294901760
    %v1638 = vsub.f32 %v1636, %v1637
    %v1639 = vand.u32 %v1638, 4294901760
    %1640 = vmatpush1.xpose.msra.mxu0 %v1639
    %1641 = vmatprep.subr.mxu0 0.0
    %v1642 = vand.u32 %v1408, 4294901760
    %v1643 = vsub.f32 %v1408, %v1642
    %v1644 = vand.u32 %v1643, 4294901760
    %v1645 = vsub.f32 %v1643, %v1644
    %v1646 = vand.u32 %v1645, 4294901760
    %1647 = vmatpush1.xpose.msra.mxu0 %v1646
    %1648 = vmatprep.subr.mxu0 0.0
    %v1649 = vand.u32 %v1405, 4294901760
    %v1650 = vsub.f32 %v1405, %v1649
    %v1651 = vand.u32 %v1650, 4294901760
    %v1652 = vsub.f32 %v1650, %v1651
    %v1653 = vand.u32 %v1652, 4294901760
    %1654 = vmatpush1.xpose.msra.mxu0 %v1653
    %1655 = vmatprep.subr.mxu0 0.0
    %1656 = vmatpush2.xpose.msra.mxu0 0.0
    %1657 = vmatprep.subr.mxu0 0.0
    %1658 = vmatpush2.xpose.msra.mxu0 0.0
    %1659 = vmatprep.subr.mxu0 0.0
    %1660 = vmatpush2.xpose.msra.mxu0 0.0
    %1661 = vmatprep.subr.mxu0 0.0
    %1662 = vmatpush2.xpose.msra.mxu0 0.0
    %1663 = vmatprep.subr.mxu0 0.0
    %1664 = vmatpush2.xpose.msra.mxu0 0.0
    %1665 = vmatprep.subr.mxu0 0.0
    %1666 = vmatpush2.xpose.msra.mxu0 0.0
    %1667 = vmatprep.subr.mxu0 0.0
    %1668 = vmatpush2.xpose.msra.mxu0 0.0
    %1669 = vmatprep.subr.mxu0 0.0
    %1670 = vmatpush2.xpose.msra.mxu0 0.0
    %1671 = vmatprep.subr.mxu0 0.0
    %1672 = vmatpush2.xpose.msra.mxu0 0.0
    %1673 = vmatprep.subr.mxu0 0.0
    %1674 = vmatpush2.xpose.msra.mxu0 0.0
    %1675 = vmatprep.subr.mxu0 0.0
    %1676 = vmatpush2.xpose.msra.mxu0 0.0
    %1677 = vmatprep.subr.mxu0 0.0
    %1678 = vmatpush2.xpose.msra.mxu0 0.0
    %1679 = vmatprep.subr.mxu0 0.0
    %1680 = vmatpush2.xpose.msra.mxu0 0.0
    %1681 = vmatprep.subr.mxu0 0.0
    %1682 = vmatpush2.xpose.msra.mxu0 0.0
    %1683 = vmatprep.subr.mxu0 0.0
    %1684 = vmatpush2.xpose.msra.mxu0 0.0
    %1685 = vmatprep.subr.mxu0 0.0
    %1686 = vmatpush2.xpose.msra.mxu0 0.0
    %1687 = vmatprep.mubr.f32.mxu0 0.0
    %v1688 = vand.u32 %v1402, 4294901760
    %1689 = vmatmul.mubr.f32.gmra.mxu0 %v1688
    %v1690 = vpop.f32.mrf.mxu0
    %v1691 = vadd.f32 %v1540, %v1690
    %v1692 = vpop.f32.mrf.mxu0
    %1693 = vdwg.mxu0
    %1694 = vmatprep.subr.mxu0 0.0
    %v1695 = vand.u32 %v1450, 4294901760
    %v1696 = vsub.f32 %v1450, %v1695
    %1697 = vmatpush1.xpose.msra.mxu0 %v1696
    %1698 = vmatprep.subr.mxu0 0.0
    %v1699 = vand.u32 %v1447, 4294901760
    %v1700 = vsub.f32 %v1447, %v1699
    %1701 = vmatpush1.xpose.msra.mxu0 %v1700
    %1702 = vmatprep.subr.mxu0 0.0
    %v1703 = vand.u32 %v1444, 4294901760
    %v1704 = vsub.f32 %v1444, %v1703
    %1705 = vmatpush1.xpose.msra.mxu0 %v1704
    %1706 = vmatprep.subr.mxu0 0.0
    %v1707 = vand.u32 %v1441, 4294901760
    %v1708 = vsub.f32 %v1441, %v1707
    %1709 = vmatpush1.xpose.msra.mxu0 %v1708
    %1710 = vmatprep.subr.mxu0 0.0
    %v1711 = vand.u32 %v1438, 4294901760
    %v1712 = vsub.f32 %v1438, %v1711
    %1713 = vmatpush1.xpose.msra.mxu0 %v1712
    %1714 = vmatprep.subr.mxu0 0.0
    %v1715 = vand.u32 %v1435, 4294901760
    %v1716 = vsub.f32 %v1435, %v1715
    %1717 = vmatpush1.xpose.msra.mxu0 %v1716
    %1718 = vmatprep.subr.mxu0 0.0
    %v1719 = vand.u32 %v1432, 4294901760
    %v1720 = vsub.f32 %v1432, %v1719
    %1721 = vmatpush1.xpose.msra.mxu0 %v1720
    %1722 = vmatprep.subr.mxu0 0.0
    %v1723 = vand.u32 %v1429, 4294901760
    %v1724 = vsub.f32 %v1429, %v1723
    %1725 = vmatpush1.xpose.msra.mxu0 %v1724
    %1726 = vmatprep.subr.mxu0 0.0
    %v1727 = vand.u32 %v1426, 4294901760
    %v1728 = vsub.f32 %v1426, %v1727
    %1729 = vmatpush1.xpose.msra.mxu0 %v1728
    %1730 = vmatprep.subr.mxu0 0.0
    %v1731 = vand.u32 %v1423, 4294901760
    %v1732 = vsub.f32 %v1423, %v1731
    %1733 = vmatpush1.xpose.msra.mxu0 %v1732
    %1734 = vmatprep.subr.mxu0 0.0
    %v1735 = vand.u32 %v1420, 4294901760
    %v1736 = vsub.f32 %v1420, %v1735
    %1737 = vmatpush1.xpose.msra.mxu0 %v1736
    %1738 = vmatprep.subr.mxu0 0.0
    %v1739 = vand.u32 %v1417, 4294901760
    %v1740 = vsub.f32 %v1417, %v1739
    %1741 = vmatpush1.xpose.msra.mxu0 %v1740
    %1742 = vmatprep.subr.mxu0 0.0
    %v1743 = vand.u32 %v1414, 4294901760
    %v1744 = vsub.f32 %v1414, %v1743
    %1745 = vmatpush1.xpose.msra.mxu0 %v1744
    %1746 = vmatprep.subr.mxu0 0.0
    %v1747 = vand.u32 %v1411, 4294901760
    %v1748 = vsub.f32 %v1411, %v1747
    %1749 = vmatpush1.xpose.msra.mxu0 %v1748
    %1750 = vmatprep.subr.mxu0 0.0
    %v1751 = vand.u32 %v1408, 4294901760
    %v1752 = vsub.f32 %v1408, %v1751
    %1753 = vmatpush1.xpose.msra.mxu0 %v1752
    %1754 = vmatprep.subr.mxu0 0.0
    %v1755 = vand.u32 %v1405, 4294901760
    %v1756 = vsub.f32 %v1405, %v1755
    %1757 = vmatpush1.xpose.msra.mxu0 %v1756
    %1758 = vmatprep.subr.mxu0 0.0
    %1759 = vmatpush2.xpose.msra.mxu0 0.0
    %1760 = vmatprep.subr.mxu0 0.0
    %1761 = vmatpush2.xpose.msra.mxu0 0.0
    %1762 = vmatprep.subr.mxu0 0.0
    %1763 = vmatpush2.xpose.msra.mxu0 0.0
    %1764 = vmatprep.subr.mxu0 0.0
    %1765 = vmatpush2.xpose.msra.mxu0 0.0
    %1766 = vmatprep.subr.mxu0 0.0
    %1767 = vmatpush2.xpose.msra.mxu0 0.0
    %1768 = vmatprep.subr.mxu0 0.0
    %1769 = vmatpush2.xpose.msra.mxu0 0.0
    %1770 = vmatprep.subr.mxu0 0.0
    %1771 = vmatpush2.xpose.msra.mxu0 0.0
    %1772 = vmatprep.subr.mxu0 0.0
    %1773 = vmatpush2.xpose.msra.mxu0 0.0
    %1774 = vmatprep.subr.mxu0 0.0
    %1775 = vmatpush2.xpose.msra.mxu0 0.0
    %1776 = vmatprep.subr.mxu0 0.0
    %1777 = vmatpush2.xpose.msra.mxu0 0.0
    %1778 = vmatprep.subr.mxu0 0.0
    %1779 = vmatpush2.xpose.msra.mxu0 0.0
    %1780 = vmatprep.subr.mxu0 0.0
    %1781 = vmatpush2.xpose.msra.mxu0 0.0
    %1782 = vmatprep.subr.mxu0 0.0
    %1783 = vmatpush2.xpose.msra.mxu0 0.0
    %1784 = vmatprep.subr.mxu0 0.0
    %1785 = vmatpush2.xpose.msra.mxu0 0.0
    %1786 = vmatprep.subr.mxu0 0.0
    %1787 = vmatpush2.xpose.msra.mxu0 0.0
    %1788 = vmatprep.subr.mxu0 0.0
    %1789 = vmatpush2.xpose.msra.mxu0 0.0
    %1790 = vmatprep.mubr.f32.mxu0 0.0
    %v1791 = vand.u32 %v1402, 4294901760
    %v1792 = vsub.f32 %v1402, %v1791
    %1793 = vmatmul.mubr.f32.gmra.mxu0 %v1792
    %v1794 = vpop.f32.mrf.mxu0
    %v1795 = vadd.f32 %v1691, %v1794
    %v1796 = vpop.f32.mrf.mxu0
    %1797 = vdwg.mxu0
    %1798 = vmatprep.subr.mxu0 0.0
    %v1799 = vand.u32 %v1450, 4294901760
    %1800 = vmatpush1.xpose.msra.mxu0 %v1799
    %1801 = vmatprep.subr.mxu0 0.0
    %v1802 = vand.u32 %v1447, 4294901760
    %1803 = vmatpush1.xpose.msra.mxu0 %v1802
    %1804 = vmatprep.subr.mxu0 0.0
    %v1805 = vand.u32 %v1444, 4294901760
    %1806 = vmatpush1.xpose.msra.mxu0 %v1805
    %1807 = vmatprep.subr.mxu0 0.0
    %v1808 = vand.u32 %v1441, 4294901760
    %1809 = vmatpush1.xpose.msra.mxu0 %v1808
    %1810 = vmatprep.subr.mxu0 0.0
    %v1811 = vand.u32 %v1438, 4294901760
    %1812 = vmatpush1.xpose.msra.mxu0 %v1811
    %1813 = vmatprep.subr.mxu0 0.0
    %v1814 = vand.u32 %v1435, 4294901760
    %1815 = vmatpush1.xpose.msra.mxu0 %v1814
    %1816 = vmatprep.subr.mxu0 0.0
    %v1817 = vand.u32 %v1432, 4294901760
    %1818 = vmatpush1.xpose.msra.mxu0 %v1817
    %1819 = vmatprep.subr.mxu0 0.0
    %v1820 = vand.u32 %v1429, 4294901760
    %1821 = vmatpush1.xpose.msra.mxu0 %v1820
    %1822 = vmatprep.subr.mxu0 0.0
    %v1823 = vand.u32 %v1426, 4294901760
    %1824 = vmatpush1.xpose.msra.mxu0 %v1823
    %1825 = vmatprep.subr.mxu0 0.0
    %v1826 = vand.u32 %v1423, 4294901760
    %1827 = vmatpush1.xpose.msra.mxu0 %v1826
    %1828 = vmatprep.subr.mxu0 0.0
    %v1829 = vand.u32 %v1420, 4294901760
    %1830 = vmatpush1.xpose.msra.mxu0 %v1829
    %1831 = vmatprep.subr.mxu0 0.0
    %v1832 = vand.u32 %v1417, 4294901760
    %1833 = vmatpush1.xpose.msra.mxu0 %v1832
    %1834 = vmatprep.subr.mxu0 0.0
    %v1835 = vand.u32 %v1414, 4294901760
    %1836 = vmatpush1.xpose.msra.mxu0 %v1835
    %1837 = vmatprep.subr.mxu0 0.0
    %v1838 = vand.u32 %v1411, 4294901760
    %1839 = vmatpush1.xpose.msra.mxu0 %v1838
    %1840 = vmatprep.subr.mxu0 0.0
    %v1841 = vand.u32 %v1408, 4294901760
    %1842 = vmatpush1.xpose.msra.mxu0 %v1841
    %1843 = vmatprep.subr.mxu0 0.0
    %v1844 = vand.u32 %v1405, 4294901760
    %1845 = vmatpush1.xpose.msra.mxu0 %v1844
    %1846 = vmatprep.subr.mxu0 0.0
    %1847 = vmatpush2.xpose.msra.mxu0 0.0
    %1848 = vmatprep.subr.mxu0 0.0
    %1849 = vmatpush2.xpose.msra.mxu0 0.0
    %1850 = vmatprep.subr.mxu0 0.0
    %1851 = vmatpush2.xpose.msra.mxu0 0.0
    %1852 = vmatprep.subr.mxu0 0.0
    %1853 = vmatpush2.xpose.msra.mxu0 0.0
    %1854 = vmatprep.subr.mxu0 0.0
    %1855 = vmatpush2.xpose.msra.mxu0 0.0
    %1856 = vmatprep.subr.mxu0 0.0
    %1857 = vmatpush2.xpose.msra.mxu0 0.0
    %1858 = vmatprep.subr.mxu0 0.0
    %1859 = vmatpush2.xpose.msra.mxu0 0.0
    %1860 = vmatprep.subr.mxu0 0.0
    %1861 = vmatpush2.xpose.msra.mxu0 0.0
    %1862 = vmatprep.subr.mxu0 0.0
    %1863 = vmatpush2.xpose.msra.mxu0 0.0
    %1864 = vmatprep.subr.mxu0 0.0
    %1865 = vmatpush2.xpose.msra.mxu0 0.0
    %1866 = vmatprep.subr.mxu0 0.0
    %1867 = vmatpush2.xpose.msra.mxu0 0.0
    %1868 = vmatprep.subr.mxu0 0.0
    %1869 = vmatpush2.xpose.msra.mxu0 0.0
    %1870 = vmatprep.subr.mxu0 0.0
    %1871 = vmatpush2.xpose.msra.mxu0 0.0
    %1872 = vmatprep.subr.mxu0 0.0
    %1873 = vmatpush2.xpose.msra.mxu0 0.0
    %1874 = vmatprep.subr.mxu0 0.0
    %1875 = vmatpush2.xpose.msra.mxu0 0.0
    %1876 = vmatprep.subr.mxu0 0.0
    %1877 = vmatpush2.xpose.msra.mxu0 0.0
    %1878 = vmatprep.mubr.f32.mxu0 0.0
    %v1879 = vand.u32 %v1402, 4294901760
    %v1880 = vsub.f32 %v1402, %v1879
    %v1881 = vand.u32 %v1880, 4294901760
    %1882 = vmatmul.mubr.f32.gmra.mxu0 %v1881
    %v1883 = vpop.f32.mrf.mxu0
    %v1884 = vadd.f32 %v1795, %v1883
    %v1885 = vpop.f32.mrf.mxu0
    %1886 = vdwg.mxu0
    %1887 = vmatprep.subr.mxu0 0.0
    %v1888 = vand.u32 %v1450, 4294901760
    %v1889 = vsub.f32 %v1450, %v1888
    %v1890 = vand.u32 %v1889, 4294901760
    %1891 = vmatpush1.xpose.msra.mxu0 %v1890
    %1892 = vmatprep.subr.mxu0 0.0
    %v1893 = vand.u32 %v1447, 4294901760
    %v1894 = vsub.f32 %v1447, %v1893
    %v1895 = vand.u32 %v1894, 4294901760
    %1896 = vmatpush1.xpose.msra.mxu0 %v1895
    %1897 = vmatprep.subr.mxu0 0.0
    %v1898 = vand.u32 %v1444, 4294901760
    %v1899 = vsub.f32 %v1444, %v1898
    %v1900 = vand.u32 %v1899, 4294901760
    %1901 = vmatpush1.xpose.msra.mxu0 %v1900
    %1902 = vmatprep.subr.mxu0 0.0
    %v1903 = vand.u32 %v1441, 4294901760
    %v1904 = vsub.f32 %v1441, %v1903
    %v1905 = vand.u32 %v1904, 4294901760
    %1906 = vmatpush1.xpose.msra.mxu0 %v1905
    %1907 = vmatprep.subr.mxu0 0.0
    %v1908 = vand.u32 %v1438, 4294901760
    %v1909 = vsub.f32 %v1438, %v1908
    %v1910 = vand.u32 %v1909, 4294901760
    %1911 = vmatpush1.xpose.msra.mxu0 %v1910
    %1912 = vmatprep.subr.mxu0 0.0
    %v1913 = vand.u32 %v1435, 4294901760
    %v1914 = vsub.f32 %v1435, %v1913
    %v1915 = vand.u32 %v1914, 4294901760
    %1916 = vmatpush1.xpose.msra.mxu0 %v1915
    %1917 = vmatprep.subr.mxu0 0.0
    %v1918 = vand.u32 %v1432, 4294901760
    %v1919 = vsub.f32 %v1432, %v1918
    %v1920 = vand.u32 %v1919, 4294901760
    %1921 = vmatpush1.xpose.msra.mxu0 %v1920
    %1922 = vmatprep.subr.mxu0 0.0
    %v1923 = vand.u32 %v1429, 4294901760
    %v1924 = vsub.f32 %v1429, %v1923
    %v1925 = vand.u32 %v1924, 4294901760
    %1926 = vmatpush1.xpose.msra.mxu0 %v1925
    %1927 = vmatprep.subr.mxu0 0.0
    %v1928 = vand.u32 %v1426, 4294901760
    %v1929 = vsub.f32 %v1426, %v1928
    %v1930 = vand.u32 %v1929, 4294901760
    %1931 = vmatpush1.xpose.msra.mxu0 %v1930
    %1932 = vmatprep.subr.mxu0 0.0
    %v1933 = vand.u32 %v1423, 4294901760
    %v1934 = vsub.f32 %v1423, %v1933
    %v1935 = vand.u32 %v1934, 4294901760
    %1936 = vmatpush1.xpose.msra.mxu0 %v1935
    %1937 = vmatprep.subr.mxu0 0.0
    %v1938 = vand.u32 %v1420, 4294901760
    %v1939 = vsub.f32 %v1420, %v1938
    %v1940 = vand.u32 %v1939, 4294901760
    %1941 = vmatpush1.xpose.msra.mxu0 %v1940
    %1942 = vmatprep.subr.mxu0 0.0
    %v1943 = vand.u32 %v1417, 4294901760
    %v1944 = vsub.f32 %v1417, %v1943
    %v1945 = vand.u32 %v1944, 4294901760
    %1946 = vmatpush1.xpose.msra.mxu0 %v1945
    %1947 = vmatprep.subr.mxu0 0.0
    %v1948 = vand.u32 %v1414, 4294901760
    %v1949 = vsub.f32 %v1414, %v1948
    %v1950 = vand.u32 %v1949, 4294901760
    %1951 = vmatpush1.xpose.msra.mxu0 %v1950
    %1952 = vmatprep.subr.mxu0 0.0
    %v1953 = vand.u32 %v1411, 4294901760
    %v1954 = vsub.f32 %v1411, %v1953
    %v1955 = vand.u32 %v1954, 4294901760
    %1956 = vmatpush1.xpose.msra.mxu0 %v1955
    %1957 = vmatprep.subr.mxu0 0.0
    %v1958 = vand.u32 %v1408, 4294901760
    %v1959 = vsub.f32 %v1408, %v1958
    %v1960 = vand.u32 %v1959, 4294901760
    %1961 = vmatpush1.xpose.msra.mxu0 %v1960
    %1962 = vmatprep.subr.mxu0 0.0
    %v1963 = vand.u32 %v1405, 4294901760
    %v1964 = vsub.f32 %v1405, %v1963
    %v1965 = vand.u32 %v1964, 4294901760
    %1966 = vmatpush1.xpose.msra.mxu0 %v1965
    %1967 = vmatprep.subr.mxu0 0.0
    %1968 = vmatpush2.xpose.msra.mxu0 0.0
    %1969 = vmatprep.subr.mxu0 0.0
    %1970 = vmatpush2.xpose.msra.mxu0 0.0
    %1971 = vmatprep.subr.mxu0 0.0
    %1972 = vmatpush2.xpose.msra.mxu0 0.0
    %1973 = vmatprep.subr.mxu0 0.0
    %1974 = vmatpush2.xpose.msra.mxu0 0.0
    %1975 = vmatprep.subr.mxu0 0.0
    %1976 = vmatpush2.xpose.msra.mxu0 0.0
    %1977 = vmatprep.subr.mxu0 0.0
    %1978 = vmatpush2.xpose.msra.mxu0 0.0
    %1979 = vmatprep.subr.mxu0 0.0
    %1980 = vmatpush2.xpose.msra.mxu0 0.0
    %1981 = vmatprep.subr.mxu0 0.0
    %1982 = vmatpush2.xpose.msra.mxu0 0.0
    %1983 = vmatprep.subr.mxu0 0.0
    %1984 = vmatpush2.xpose.msra.mxu0 0.0
    %1985 = vmatprep.subr.mxu0 0.0
    %1986 = vmatpush2.xpose.msra.mxu0 0.0
    %1987 = vmatprep.subr.mxu0 0.0
    %1988 = vmatpush2.xpose.msra.mxu0 0.0
    %1989 = vmatprep.subr.mxu0 0.0
    %1990 = vmatpush2.xpose.msra.mxu0 0.0
    %1991 = vmatprep.subr.mxu0 0.0
    %1992 = vmatpush2.xpose.msra.mxu0 0.0
    %1993 = vmatprep.subr.mxu0 0.0
    %1994 = vmatpush2.xpose.msra.mxu0 0.0
    %1995 = vmatprep.subr.mxu0 0.0
    %1996 = vmatpush2.xpose.msra.mxu0 0.0
    %1997 = vmatprep.subr.mxu0 0.0
    %1998 = vmatpush2.xpose.msra.mxu0 0.0
    %1999 = vmatprep.mubr.f32.mxu0 0.0
    %v2000 = vand.u32 %v1402, 4294901760
    %2001 = vmatmul.mubr.f32.gmra.mxu0 %v2000
    %v2002 = vpop.f32.mrf.mxu0
    %v2003 = vadd.f32 %v1884, %v2002
    %v2004 = vpop.f32.mrf.mxu0
    %2005 = vdwg.mxu0
    %2006 = vmatprep.subr.mxu0 0.0
    %v2007 = vand.u32 %v1450, 4294901760
    %2008 = vmatpush1.xpose.msra.mxu0 %v2007
    %2009 = vmatprep.subr.mxu0 0.0
    %v2010 = vand.u32 %v1447, 4294901760
    %2011 = vmatpush1.xpose.msra.mxu0 %v2010
    %2012 = vmatprep.subr.mxu0 0.0
    %v2013 = vand.u32 %v1444, 4294901760
    %2014 = vmatpush1.xpose.msra.mxu0 %v2013
    %2015 = vmatprep.subr.mxu0 0.0
    %v2016 = vand.u32 %v1441, 4294901760
    %2017 = vmatpush1.xpose.msra.mxu0 %v2016
    %2018 = vmatprep.subr.mxu0 0.0
    %v2019 = vand.u32 %v1438, 4294901760
    %2020 = vmatpush1.xpose.msra.mxu0 %v2019
    %2021 = vmatprep.subr.mxu0 0.0
    %v2022 = vand.u32 %v1435, 4294901760
    %2023 = vmatpush1.xpose.msra.mxu0 %v2022
    %2024 = vmatprep.subr.mxu0 0.0
    %v2025 = vand.u32 %v1432, 4294901760
    %2026 = vmatpush1.xpose.msra.mxu0 %v2025
    %2027 = vmatprep.subr.mxu0 0.0
    %v2028 = vand.u32 %v1429, 4294901760
    %2029 = vmatpush1.xpose.msra.mxu0 %v2028
    %2030 = vmatprep.subr.mxu0 0.0
    %v2031 = vand.u32 %v1426, 4294901760
    %2032 = vmatpush1.xpose.msra.mxu0 %v2031
    %2033 = vmatprep.subr.mxu0 0.0
    %v2034 = vand.u32 %v1423, 4294901760
    %2035 = vmatpush1.xpose.msra.mxu0 %v2034
    %2036 = vmatprep.subr.mxu0 0.0
    %v2037 = vand.u32 %v1420, 4294901760
    %2038 = vmatpush1.xpose.msra.mxu0 %v2037
    %2039 = vmatprep.subr.mxu0 0.0
    %v2040 = vand.u32 %v1417, 4294901760
    %2041 = vmatpush1.xpose.msra.mxu0 %v2040
    %2042 = vmatprep.subr.mxu0 0.0
    %v2043 = vand.u32 %v1414, 4294901760
    %2044 = vmatpush1.xpose.msra.mxu0 %v2043
    %2045 = vmatprep.subr.mxu0 0.0
    %v2046 = vand.u32 %v1411, 4294901760
    %2047 = vmatpush1.xpose.msra.mxu0 %v2046
    %2048 = vmatprep.subr.mxu0 0.0
    %v2049 = vand.u32 %v1408, 4294901760
    %2050 = vmatpush1.xpose.msra.mxu0 %v2049
    %2051 = vmatprep.subr.mxu0 0.0
    %v2052 = vand.u32 %v1405, 4294901760
    %2053 = vmatpush1.xpose.msra.mxu0 %v2052
    %2054 = vmatprep.subr.mxu0 0.0
    %2055 = vmatpush2.xpose.msra.mxu0 0.0
    %2056 = vmatprep.subr.mxu0 0.0
    %2057 = vmatpush2.xpose.msra.mxu0 0.0
    %2058 = vmatprep.subr.mxu0 0.0
    %2059 = vmatpush2.xpose.msra.mxu0 0.0
    %2060 = vmatprep.subr.mxu0 0.0
    %2061 = vmatpush2.xpose.msra.mxu0 0.0
    %2062 = vmatprep.subr.mxu0 0.0
    %2063 = vmatpush2.xpose.msra.mxu0 0.0
    %2064 = vmatprep.subr.mxu0 0.0
    %2065 = vmatpush2.xpose.msra.mxu0 0.0
    %2066 = vmatprep.subr.mxu0 0.0
    %2067 = vmatpush2.xpose.msra.mxu0 0.0
    %2068 = vmatprep.subr.mxu0 0.0
    %2069 = vmatpush2.xpose.msra.mxu0 0.0
    %2070 = vmatprep.subr.mxu0 0.0
    %2071 = vmatpush2.xpose.msra.mxu0 0.0
    %2072 = vmatprep.subr.mxu0 0.0
    %2073 = vmatpush2.xpose.msra.mxu0 0.0
    %2074 = vmatprep.subr.mxu0 0.0
    %2075 = vmatpush2.xpose.msra.mxu0 0.0
    %2076 = vmatprep.subr.mxu0 0.0
    %2077 = vmatpush2.xpose.msra.mxu0 0.0
    %2078 = vmatprep.subr.mxu0 0.0
    %2079 = vmatpush2.xpose.msra.mxu0 0.0
    %2080 = vmatprep.subr.mxu0 0.0
    %2081 = vmatpush2.xpose.msra.mxu0 0.0
    %2082 = vmatprep.subr.mxu0 0.0
    %2083 = vmatpush2.xpose.msra.mxu0 0.0
    %2084 = vmatprep.subr.mxu0 0.0
    %2085 = vmatpush2.xpose.msra.mxu0 0.0
    %2086 = vmatprep.mubr.f32.mxu0 0.0
    %v2087 = vand.u32 %v1402, 4294901760
    %2088 = vmatmul.mubr.f32.gmra.mxu0 %v2087
    %v2089 = vpop.f32.mrf.mxu0
    %v2090 = vadd.f32 %v2003, %v2089
    %v2091 = vpop.f32.mrf.mxu0
    %2092 = vdwg.mxu0
    %2093 = vst [vmem:[#allocation2] sm:$0x1] %v2090
    // Predicated region
    $region14: #{tpu_custom_call.1} parent=1 // pred_check
      _
    $region15: #{tpu_custom_call.1} parent=1 // pred_check_branch
      %2095 = sbr.rel (0) target = $region17
    $region16: #{tpu_custom_call.1} parent=1 // pred_region
      %s2097 = ssub.s32 16, 16
      %2098 = vsyncadd [#allocation3], %s2097
      %s2100 = sshll.u32 [#allocation2], 4
      %s2101 = int_to_ptr.vmem [resolvable:$true] %s2100
      %2103 = dma.vmem_to_hbm [thread:$0]  %s2101, 16, %s3, [#allocation3]
    $region17: #{tpu_custom_call.1} parent=1 // pred_fallthru
      _
    // Predicated region
    $region18: #{tpu_custom_call.1} parent=1 // pred_check
      _
    $region19: #{tpu_custom_call.1} parent=1 // pred_check_branch
      %2105 = sbr.rel (0) target = $region21
    $region20: #{tpu_custom_call.1} parent=1 // pred_region
      %2106 = dma.done [#allocation3], 16
    $region21: #{tpu_custom_call.1} parent=1 // pred_fallthru
      _
    %2107 = vsyncpa [#allocation3], 1

</llo_original>
